<compile_context>
chip_gen: v7x
topology: tpu7x:2x2x1
jax: 0.10.0
libtpu: 0.0.40
codegen_flags: <defaults>
</compile_context>

<pallas_src>
import math

import jax
import jax.numpy as jnp
import numpy as np
from jax.experimental import pallas as pl
from jax.experimental.pallas import tpu as pltpu


# ----------------------------------------------------------------------------
# Kernels
# ----------------------------------------------------------------------------
def _decoder_pool_kernel(x1_ref, x2_ref, g_ref, w_ref, shift_ref, o_ref, cc_ref):
    """Fused 2x2 max-pool + 1x1 conv over concat + BN(shift) + ReLU.

    Block shapes (channels on sublanes, lane-dense flat spatial tile on lanes):
      x1_ref : (C1, tr, 2*W)   tr output rows; last dim = [input row 2t | 2t+1]
      x2_ref : (C2, tn)        tn = tr * W2, flat spatial tile
      g_ref  : (W, 2*W2)       one-hot select: cols [0:W2]=even cols, [W2:]=odd
      w_ref  : (Cout, C1+C2)   conv weight with BN scale folded in
      shift  : (Cout, 1)       folded BN shift
      o_ref  : (Cout, tn)
      cc_ref : (C1+C2, tn)     VMEM scratch holding concat([pooled_x1, x2])
    """
    c1, tr, two_w = x1_ref.shape
    w_in = two_w // 2                 # input image width W (= 2*W2)
    w2 = g_ref.shape[1] // 2          # output image width W2

    x1b = x1_ref[...]
    # Vertical 2->1 max (VPU): first lane-half is input row 2t, second is 2t+1.
    vmax = jnp.maximum(x1b[:, :, :w_in], x1b[:, :, w_in:])          # (C1, tr, W)
    # Horizontal pair-max + column compaction: one tiny exact one-hot matmul
    # gathers even/odd columns side by side, then a VPU max combines them.
    v2 = vmax.reshape(c1 * tr, w_in)
    pair = jnp.dot(v2, g_ref[...], preferred_element_type=jnp.float32)  # (C1*tr, 2*W2)
    pooled = jnp.maximum(pair[:, :w2], pair[:, w2:])                 # (C1*tr, W2)
    pooled = pooled.reshape(c1, tr, w2).astype(cc_ref.dtype)

    # Scatter the pooled rows into the lane-dense flat-spatial concat scratch.
    for t in range(tr):
        cc_ref[0:c1, t * w2:(t + 1) * w2] = pooled[:, t, :]
    cc_ref[c1:, :] = x2_ref[...]

    # Single fused 1x1 conv over the concatenated channels (K = C1+C2).
    acc = jnp.dot(w_ref[...], cc_ref[...], preferred_element_type=jnp.float32)
    o_ref[...] = jnp.maximum(acc + shift_ref[...], 0.0).astype(o_ref.dtype)


def _decoder_nopool_kernel(x1_ref, x2_ref, w_ref, shift_ref, o_ref):
    cc = jnp.concatenate([x1_ref[...], x2_ref[...]], axis=0)        # (C1+C2, tn)
    acc = jnp.dot(w_ref[...], cc, preferred_element_type=jnp.float32)
    o_ref[...] = jnp.maximum(acc + shift_ref[...], 0.0).astype(o_ref.dtype)


# ----------------------------------------------------------------------------
# Tiling helpers
# ----------------------------------------------------------------------------
def _lcm(a, b):
    return a * b // math.gcd(a, b)


def _vmem_capacity_bytes():
    try:
        cap = getattr(pltpu.get_tpu_info(), "vmem_capacity_bytes", None)
        if cap:
            return int(cap)
    except Exception:
        pass
    return 64 * 1024 * 1024          # conservative default (v7x-sized)


def _tile_vmem_bytes(tn, C1, C2, Cout, W2, in_item, out_item, pooled):
    """Rough per-step VMEM footprint (double-buffered streams + scratch + consts)."""
    x1_elems = (4 if pooled else 1) * C1 * tn
    stream = (x1_elems + C2 * tn) * in_item + Cout * tn * out_item
    total = 2 * stream                               # 2-deep pipeline on the streams
    total += (C1 + C2) * tn * in_item                # concat scratch (pool path)
    consts = Cout * (C1 + C2) * in_item + Cout * 4
    if pooled:
        consts += (2 * W2) * (2 * W2) * in_item      # (W, 2*W2) select matrix
    total += 2 * consts                              # assume worst case (double-buffered)
    return total


def _pick_tile(S, W2, C1, C2, Cout, in_item, out_item, pooled, batch,
               vmem_budget, lane_cap=2048):
    """Flat-spatial lane tile tn: multiple of 128 and of W2 with tr % 8 == 0
    (or tn == S), as large as the VMEM budget allows, capped at lane_cap."""
    step = _lcm(128, 8 * W2) if pooled else 128
    cands = {S}
    k = 1
    while k * step < S and k * step <= lane_cap:
        cands.add(k * step)
        k += 1
    cands = sorted(cands)

    def fits(c):
        return _tile_vmem_bytes(c, C1, C2, Cout, W2, in_item, out_item,
                                pooled) <= vmem_budget

    feasible = [c for c in cands if fits(c)]
    small_enough = [c for c in feasible if c <= lane_cap]
    if small_enough:
        tn = small_enough[-1]
    elif feasible:
        tn = feasible[0]
    else:
        tn = cands[0]                 # smallest legal tile; rely on vmem_limit_bytes

    # Keep at least 2 grid steps so both v7x TensorCores get work.
    if batch * (-(-S // tn)) < 2:
        smaller = [c for c in (feasible or cands) if (-(-S // c)) >= 2]
        if smaller:
            tn = smaller[-1]
    return tn


def _pair_select_matrix(W, W2):
    """(W, 2*W2) one-hot matrix: cols [0:W2] pick even input columns, cols
    [W2:2*W2] pick odd input columns (exact gather on the MXU)."""
    g = np.zeros((W, 2 * W2), dtype=np.float32)
    v = np.arange(W2)
    g[2 * v, v] = 1.0
    g[2 * v + 1, W2 + v] = 1.0
    return jnp.asarray(g)


# ----------------------------------------------------------------------------
# Wrapper
# ----------------------------------------------------------------------------
def decoder_forward(x1, x2, weight, gamma, beta, running_mean, running_var,
                    *, downsample=True, eps=1e-5,
                    compute_dtype=jnp.float32, out_dtype=jnp.float32):
    """Pallas TPU forward of the PyTorch `decoder` module (eval-mode BN).

    x1: (B, C1, H, W), x2: (B, C2, H2, W2) NCHW; weight: (Cout, C1+C2, 1, 1).
    """
    B, C1, H, W = x1.shape
    _, C2, H2, W2 = x2.shape
    Cout = weight.shape[0]
    Ctot = C1 + C2
    assert weight.shape[1] == Ctot

    if downsample:
        assert H == 2 * H2 and W == 2 * W2, "x1 must be 2x the spatial size of x2"
    else:
        assert (H, W) == (H2, W2), "without pooling x1/x2 spatial dims must match"

    # ---- fold BatchNorm (eval) into the conv weight + a per-channel shift ----
    inv_std = 1.0 / jnp.sqrt(running_var.astype(jnp.float32) + eps)
    scale = gamma.astype(jnp.float32) * inv_std                          # (Cout,)
    shift = (beta.astype(jnp.float32)
             - running_mean.astype(jnp.float32) * scale).reshape(Cout, 1)
    w_mat = (weight.reshape(Cout, Ctot).astype(jnp.float32)
             * scale[:, None]).astype(compute_dtype)                    # (Cout, Ctot)

    S = H2 * W2                       # output spatial per image (lane axis)
    in_item = jnp.dtype(compute_dtype).itemsize
    out_item = jnp.dtype(out_dtype).itemsize
    vmem_cap = _vmem_capacity_bytes()
    tn = _pick_tile(S, W2, C1, C2, Cout, in_item, out_item, downsample, B,
                    vmem_budget=int(vmem_cap * 0.6))
    grid = (B, pl.cdiv(S, tn))

    # Channel-major views with spatial flattened on the last (lane) axis.
    # These are free reshapes of NCHW - no transposes / slices / pads in HBM.
    x2v = x2.reshape(B, C2, S).astype(compute_dtype)
    out_shape = jax.ShapeDtypeStruct((B, Cout, S), out_dtype)
    x2_spec = pl.BlockSpec((None, C2, tn), lambda b, i: (b, 0, i))
    out_spec = pl.BlockSpec((None, Cout, tn), lambda b, i: (b, 0, i))

    compiler_params = pltpu.CompilerParams(
        dimension_semantics=("parallel", "parallel"),
        vmem_limit_bytes=min(int(vmem_cap * 0.85), 128 * 1024 * 1024))

    def _call(single_buffer_consts):
        def cspec(shape):
            # Constant-index operands: single-buffer to halve their VMEM cost.
            if single_buffer_consts:
                return pl.BlockSpec(shape, lambda b, i: (0, 0),
                                    pipeline_mode=pl.Buffered(1))
            return pl.BlockSpec(shape, lambda b, i: (0, 0))

        if downsample:
            tr = tn // W2
            # Row-pair layout: element (b, c, t, j) = x1[b, c, 2t + j//W, j%W].
            x1v = x1.reshape(B, C1, H2, 2 * W).astype(compute_dtype)
            g = _pair_select_matrix(W, W2).astype(compute_dtype)
            in_specs = [
                pl.BlockSpec((None, C1, tr, 2 * W), lambda b, i: (b, 0, i, 0)),
                x2_spec,
                cspec((W, 2 * W2)),
                cspec((Cout, Ctot)),
                cspec((Cout, 1)),
            ]
            scratch = [pltpu.VMEM((Ctot, tn), compute_dtype)]
            args = (x1v, x2v, g, w_mat, shift)
            kernel = _decoder_pool_kernel
        else:
            x1v = x1.reshape(B, C1, S).astype(compute_dtype)
            in_specs = [
                pl.BlockSpec((None, C1, tn), lambda b, i: (b, 0, i)),
                x2_spec,
                cspec((Cout, Ctot)),
                cspec((Cout, 1)),
            ]
            scratch = []
            args = (x1v, x2v, w_mat, shift)
            kernel = _decoder_nopool_kernel

        return pl.pallas_call(
            kernel,
            out_shape=out_shape,
            grid=grid,
            in_specs=in_specs,
            out_specs=out_spec,
            scratch_shapes=scratch,
            compiler_params=compiler_params,
        )(*args)

    try:
        out = _call(True)
    except Exception:
        # pipeline_mode=pl.Buffered(1) not supported on this JAX/Mosaic build:
        # fall back to default (double-buffered) constant operands.
        out = _call(False)

    return out.reshape(B, Cout, H2, W2)            # already NCHW - free reshape


# ----------------------------------------------------------------------------
# Plain-JAX reference (eval-mode BN), reproducing the PyTorch module
# ----------------------------------------------------------------------------
def decoder_reference(x1, x2, weight, gamma, beta, rmean, rvar,
                      *, downsample=True, eps=1e-5):
    if downsample:
        x1 = jax.lax.reduce_window(x1, -jnp.inf, jax.lax.max,
                                   (1, 1, 2, 2), (1, 1, 2, 2), "VALID")
    x = jnp.concatenate([x1, x2], axis=1)
    y = jax.lax.conv_general_dilated(
        x, weight, window_strides=(1, 1), padding="VALID",
        dimension_numbers=("NCHW", "OIHW", "NCHW"))
    scale = gamma / jnp.sqrt(rvar + eps)
    shift = beta - rmean * scale
    y = y * scale[None, :, None, None] + shift[None, :, None, None]
    return jnp.maximum(y, 0.0)


if __name__ == "__main__":
    key = jax.random.PRNGKey(0)
    k1, k2, k3, k4, k5, k6, k7, k8 = jax.random.split(key, 8)

    B, C1, C2, Cout = 2, 4, 4, 16
    H = W = 32                               # x1 spatial; x2 / output spatial = 16

    x1 = jax.random.normal(k1, (B, C1, H, W), dtype=jnp.float32)
    x2 = jax.random.normal(k2, (B, C2, H // 2, W // 2), dtype=jnp.float32)

    # Deterministic synthetic parameters (shapes from the module's __init__)
    weight = jax.random.normal(k3, (Cout, C1 + C2, 1, 1), dtype=jnp.float32) * 0.1
    gamma = 1.0 + 0.1 * jax.random.normal(k4, (Cout,), dtype=jnp.float32)
    beta = 0.1 * jax.random.normal(k5, (Cout,), dtype=jnp.float32)
    running_mean = 0.05 * jax.random.normal(k6, (Cout,), dtype=jnp.float32)
    running_var = jnp.abs(1.0 + 0.1 * jax.random.normal(k7, (Cout,), dtype=jnp.float32))

    # --- downsample=True (module default): 2x2 max-pool on x1, then conv ---
    out = decoder_forward(x1, x2, weight, gamma, beta, running_mean, running_var,
                          downsample=True)
    out = jax.block_until_ready(out)
    ref = decoder_reference(x1, x2, weight, gamma, beta, running_mean, running_var,
                            downsample=True)
    ref = jax.block_until_ready(ref)
    assert out.shape == (B, Cout, H // 2, W // 2)
    assert jnp.allclose(out, ref, atol=1e-4, rtol=1e-4), \
        float(jnp.max(jnp.abs(out - ref)))

    # --- downsample=False: x1 already matches x2's spatial size ---
    x1f = jax.random.normal(k8, (B, C1, H // 2, W // 2), dtype=jnp.float32)
    out2 = decoder_forward(x1f, x2, weight, gamma, beta, running_mean, running_var,
                           downsample=False)
    out2 = jax.block_until_ready(out2)
    ref2 = decoder_reference(x1f, x2, weight, gamma, beta, running_mean, running_var,
                             downsample=False)
    assert jnp.allclose(out2, ref2, atol=1e-4, rtol=1e-4)

    # --- bf16 compute path (memory-bound win; looser numerics by design) ---
    out3 = decoder_forward(x1, x2, weight, gamma, beta, running_mean, running_var,
                           downsample=True, compute_dtype=jnp.bfloat16)
    out3 = jax.block_until_ready(out3)
    assert out3.shape == (B, Cout, H // 2, W // 2)
    assert bool(jnp.all(jnp.isfinite(out3)))

    print("KERNEL_OK")
</pallas_src>

<mosaic_0001>
module attributes {stable_mosaic.version = 11 : i64} {
  func.func @_decoder_pool_kernel(%arg0: i32, %arg1: i32, %arg2: memref<1x4x16x64xf32, #tpu.memory_space<vmem>>, %arg3: memref<1x4x256xf32, #tpu.memory_space<vmem>>, %arg4: memref<32x32xf32, #tpu.memory_space<vmem>>, %arg5: memref<16x8xf32, #tpu.memory_space<vmem>>, %arg6: memref<16x1xf32, #tpu.memory_space<vmem>>, %arg7: memref<1x16x256xf32, #tpu.memory_space<vmem>>, %arg8: memref<8x256xf32, #tpu.memory_space<vmem>>) attributes {dimension_semantics = [#tpu.dimension_semantics<parallel>, #tpu.dimension_semantics<parallel>], iteration_bounds = array<i64: 2, 1>, scalar_prefetch = 0 : i64, scratch_operands = 1 : i64, tpu.core_type = #tpu.core_type<tc>, window_params = [{transform_indices = @transform_0, window_bounds = array<i64: 1, 4, 16, 64>}, {transform_indices = @transform_1, window_bounds = array<i64: 1, 4, 256>}, {pipeline_mode = #tpu.pipeline_mode<synchronous>, transform_indices = @transform_2, window_bounds = array<i64: 32, 32>}, {pipeline_mode = #tpu.pipeline_mode<synchronous>, transform_indices = @transform_3, window_bounds = array<i64: 16, 8>}, {pipeline_mode = #tpu.pipeline_mode<synchronous>, transform_indices = @transform_4, window_bounds = array<i64: 16, 1>}, {transform_indices = @transform_5, window_bounds = array<i64: 1, 16, 256>}]} {
    %c0 = arith.constant 0 : index
    %c0_0 = arith.constant 0 : index
    %c0_1 = arith.constant 0 : index
    %c0_2 = arith.constant 0 : index
    %0 = vector.load %arg2[%c0, %c0_0, %c0_1, %c0_2] : memref<1x4x16x64xf32, #tpu.memory_space<vmem>>, vector<1x4x16x64xf32>
    %1 = vector.shape_cast %0 : vector<1x4x16x64xf32> to vector<4x16x64xf32>
    %2 = vector.extract_strided_slice %1 {offsets = [0, 0, 0], sizes = [4, 16, 32], strides = [1, 1, 1]} : vector<4x16x64xf32> to vector<4x16x32xf32>
    %3 = vector.extract_strided_slice %1 {offsets = [0, 0, 32], sizes = [4, 16, 32], strides = [1, 1, 1]} : vector<4x16x64xf32> to vector<4x16x32xf32>
    %4 = arith.maximumf %2, %3 : vector<4x16x32xf32>
    %5 = vector.shape_cast %4 : vector<4x16x32xf32> to vector<64x32xf32>
    %c0_3 = arith.constant 0 : index
    %c0_4 = arith.constant 0 : index
    %6 = vector.load %arg4[%c0_3, %c0_4] : memref<32x32xf32, #tpu.memory_space<vmem>>, vector<32x32xf32>
    %cst = arith.constant dense<0.000000e+00> : vector<64x32xf32>
    %7 = tpu.matmul %5, %6, %cst {dimension_numbers = #tpu.dot_dimension_numbers<[1], [0], [0], [1], [0, 0, 1, 1], [], []>} : vector<64x32xf32>, vector<32x32xf32>, vector<64x32xf32> -> vector<64x32xf32>
    %8 = vector.extract_strided_slice %7 {offsets = [0, 0], sizes = [64, 16], strides = [1, 1]} : vector<64x32xf32> to vector<64x16xf32>
    %9 = vector.extract_strided_slice %7 {offsets = [0, 16], sizes = [64, 16], strides = [1, 1]} : vector<64x32xf32> to vector<64x16xf32>
    %10 = arith.maximumf %8, %9 : vector<64x16xf32>
    %11 = vector.shape_cast %10 : vector<64x16xf32> to vector<4x16x16xf32>
    %12 = vector.extract_strided_slice %11 {offsets = [0, 0, 0], sizes = [4, 1, 16], strides = [1, 1, 1]} : vector<4x16x16xf32> to vector<4x1x16xf32>
    %13 = vector.shape_cast %12 : vector<4x1x16xf32> to vector<4x16xf32>
    %c0_5 = arith.constant 0 : index
    %c0_6 = arith.constant 0 : index
    %14 = vector.load %arg8[%c0_5, %c0_6] : memref<8x256xf32, #tpu.memory_space<vmem>>, vector<4x16xf32>
    tpu.vector_store %arg8[%c0_5, %c0_6], %13 {strides = array<i32>} : memref<8x256xf32, #tpu.memory_space<vmem>>, vector<4x16xf32>,
    %15 = vector.extract_strided_slice %11 {offsets = [0, 1, 0], sizes = [4, 1, 16], strides = [1, 1, 1]} : vector<4x16x16xf32> to vector<4x1x16xf32>
    %16 = vector.shape_cast %15 : vector<4x1x16xf32> to vector<4x16xf32>
    %c0_7 = arith.constant 0 : index
    %c16 = arith.constant 16 : index
    %17 = vector.load %arg8[%c0_7, %c16] : memref<8x256xf32, #tpu.memory_space<vmem>>, vector<4x16xf32>
    tpu.vector_store %arg8[%c0_7, %c16], %16 {strides = array<i32>} : memref<8x256xf32, #tpu.memory_space<vmem>>, vector<4x16xf32>,
    %18 = vector.extract_strided_slice %11 {offsets = [0, 2, 0], sizes = [4, 1, 16], strides = [1, 1, 1]} : vector<4x16x16xf32> to vector<4x1x16xf32>
    %19 = vector.shape_cast %18 : vector<4x1x16xf32> to vector<4x16xf32>
    %c0_8 = arith.constant 0 : index
    %c32 = arith.constant 32 : index
    %20 = vector.load %arg8[%c0_8, %c32] : memref<8x256xf32, #tpu.memory_space<vmem>>, vector<4x16xf32>
    tpu.vector_store %arg8[%c0_8, %c32], %19 {strides = array<i32>} : memref<8x256xf32, #tpu.memory_space<vmem>>, vector<4x16xf32>,
    %21 = vector.extract_strided_slice %11 {offsets = [0, 3, 0], sizes = [4, 1, 16], strides = [1, 1, 1]} : vector<4x16x16xf32> to vector<4x1x16xf32>
    %22 = vector.shape_cast %21 : vector<4x1x16xf32> to vector<4x16xf32>
    %c0_9 = arith.constant 0 : index
    %c48 = arith.constant 48 : index
    %23 = vector.load %arg8[%c0_9, %c48] : memref<8x256xf32, #tpu.memory_space<vmem>>, vector<4x16xf32>
    tpu.vector_store %arg8[%c0_9, %c48], %22 {strides = array<i32>} : memref<8x256xf32, #tpu.memory_space<vmem>>, vector<4x16xf32>,
    %24 = vector.extract_strided_slice %11 {offsets = [0, 4, 0], sizes = [4, 1, 16], strides = [1, 1, 1]} : vector<4x16x16xf32> to vector<4x1x16xf32>
    %25 = vector.shape_cast %24 : vector<4x1x16xf32> to vector<4x16xf32>
    %c0_10 = arith.constant 0 : index
    %c64 = arith.constant 64 : index
    %26 = vector.load %arg8[%c0_10, %c64] : memref<8x256xf32, #tpu.memory_space<vmem>>, vector<4x16xf32>
    tpu.vector_store %arg8[%c0_10, %c64], %25 {strides = array<i32>} : memref<8x256xf32, #tpu.memory_space<vmem>>, vector<4x16xf32>,
    %27 = vector.extract_strided_slice %11 {offsets = [0, 5, 0], sizes = [4, 1, 16], strides = [1, 1, 1]} : vector<4x16x16xf32> to vector<4x1x16xf32>
    %28 = vector.shape_cast %27 : vector<4x1x16xf32> to vector<4x16xf32>
    %c0_11 = arith.constant 0 : index
    %c80 = arith.constant 80 : index
    %29 = vector.load %arg8[%c0_11, %c80] : memref<8x256xf32, #tpu.memory_space<vmem>>, vector<4x16xf32>
    tpu.vector_store %arg8[%c0_11, %c80], %28 {strides = array<i32>} : memref<8x256xf32, #tpu.memory_space<vmem>>, vector<4x16xf32>,
    %30 = vector.extract_strided_slice %11 {offsets = [0, 6, 0], sizes = [4, 1, 16], strides = [1, 1, 1]} : vector<4x16x16xf32> to vector<4x1x16xf32>
    %31 = vector.shape_cast %30 : vector<4x1x16xf32> to vector<4x16xf32>
    %c0_12 = arith.constant 0 : index
    %c96 = arith.constant 96 : index
    %32 = vector.load %arg8[%c0_12, %c96] : memref<8x256xf32, #tpu.memory_space<vmem>>, vector<4x16xf32>
    tpu.vector_store %arg8[%c0_12, %c96], %31 {strides = array<i32>} : memref<8x256xf32, #tpu.memory_space<vmem>>, vector<4x16xf32>,
    %33 = vector.extract_strided_slice %11 {offsets = [0, 7, 0], sizes = [4, 1, 16], strides = [1, 1, 1]} : vector<4x16x16xf32> to vector<4x1x16xf32>
    %34 = vector.shape_cast %33 : vector<4x1x16xf32> to vector<4x16xf32>
    %c0_13 = arith.constant 0 : index
    %c112 = arith.constant 112 : index
    %35 = vector.load %arg8[%c0_13, %c112] : memref<8x256xf32, #tpu.memory_space<vmem>>, vector<4x16xf32>
    tpu.vector_store %arg8[%c0_13, %c112], %34 {strides = array<i32>} : memref<8x256xf32, #tpu.memory_space<vmem>>, vector<4x16xf32>,
    %36 = vector.extract_strided_slice %11 {offsets = [0, 8, 0], sizes = [4, 1, 16], strides = [1, 1, 1]} : vector<4x16x16xf32> to vector<4x1x16xf32>
    %37 = vector.shape_cast %36 : vector<4x1x16xf32> to vector<4x16xf32>
    %c0_14 = arith.constant 0 : index
    %c128 = arith.constant 128 : index
    %38 = vector.load %arg8[%c0_14, %c128] : memref<8x256xf32, #tpu.memory_space<vmem>>, vector<4x16xf32>
    tpu.vector_store %arg8[%c0_14, %c128], %37 {strides = array<i32>} : memref<8x256xf32, #tpu.memory_space<vmem>>, vector<4x16xf32>,
    %39 = vector.extract_strided_slice %11 {offsets = [0, 9, 0], sizes = [4, 1, 16], strides = [1, 1, 1]} : vector<4x16x16xf32> to vector<4x1x16xf32>
    %40 = vector.shape_cast %39 : vector<4x1x16xf32> to vector<4x16xf32>
    %c0_15 = arith.constant 0 : index
    %c144 = arith.constant 144 : index
    %41 = vector.load %arg8[%c0_15, %c144] : memref<8x256xf32, #tpu.memory_space<vmem>>, vector<4x16xf32>
    tpu.vector_store %arg8[%c0_15, %c144], %40 {strides = array<i32>} : memref<8x256xf32, #tpu.memory_space<vmem>>, vector<4x16xf32>,
    %42 = vector.extract_strided_slice %11 {offsets = [0, 10, 0], sizes = [4, 1, 16], strides = [1, 1, 1]} : vector<4x16x16xf32> to vector<4x1x16xf32>
    %43 = vector.shape_cast %42 : vector<4x1x16xf32> to vector<4x16xf32>
    %c0_16 = arith.constant 0 : index
    %c160 = arith.constant 160 : index
    %44 = vector.load %arg8[%c0_16, %c160] : memref<8x256xf32, #tpu.memory_space<vmem>>, vector<4x16xf32>
    tpu.vector_store %arg8[%c0_16, %c160], %43 {strides = array<i32>} : memref<8x256xf32, #tpu.memory_space<vmem>>, vector<4x16xf32>,
    %45 = vector.extract_strided_slice %11 {offsets = [0, 11, 0], sizes = [4, 1, 16], strides = [1, 1, 1]} : vector<4x16x16xf32> to vector<4x1x16xf32>
    %46 = vector.shape_cast %45 : vector<4x1x16xf32> to vector<4x16xf32>
    %c0_17 = arith.constant 0 : index
    %c176 = arith.constant 176 : index
    %47 = vector.load %arg8[%c0_17, %c176] : memref<8x256xf32, #tpu.memory_space<vmem>>, vector<4x16xf32>
    tpu.vector_store %arg8[%c0_17, %c176], %46 {strides = array<i32>} : memref<8x256xf32, #tpu.memory_space<vmem>>, vector<4x16xf32>,
    %48 = vector.extract_strided_slice %11 {offsets = [0, 12, 0], sizes = [4, 1, 16], strides = [1, 1, 1]} : vector<4x16x16xf32> to vector<4x1x16xf32>
    %49 = vector.shape_cast %48 : vector<4x1x16xf32> to vector<4x16xf32>
    %c0_18 = arith.constant 0 : index
    %c192 = arith.constant 192 : index
    %50 = vector.load %arg8[%c0_18, %c192] : memref<8x256xf32, #tpu.memory_space<vmem>>, vector<4x16xf32>
    tpu.vector_store %arg8[%c0_18, %c192], %49 {strides = array<i32>} : memref<8x256xf32, #tpu.memory_space<vmem>>, vector<4x16xf32>,
    %51 = vector.extract_strided_slice %11 {offsets = [0, 13, 0], sizes = [4, 1, 16], strides = [1, 1, 1]} : vector<4x16x16xf32> to vector<4x1x16xf32>
    %52 = vector.shape_cast %51 : vector<4x1x16xf32> to vector<4x16xf32>
    %c0_19 = arith.constant 0 : index
    %c208 = arith.constant 208 : index
    %53 = vector.load %arg8[%c0_19, %c208] : memref<8x256xf32, #tpu.memory_space<vmem>>, vector<4x16xf32>
    tpu.vector_store %arg8[%c0_19, %c208], %52 {strides = array<i32>} : memref<8x256xf32, #tpu.memory_space<vmem>>, vector<4x16xf32>,
    %54 = vector.extract_strided_slice %11 {offsets = [0, 14, 0], sizes = [4, 1, 16], strides = [1, 1, 1]} : vector<4x16x16xf32> to vector<4x1x16xf32>
    %55 = vector.shape_cast %54 : vector<4x1x16xf32> to vector<4x16xf32>
    %c0_20 = arith.constant 0 : index
    %c224 = arith.constant 224 : index
    %56 = vector.load %arg8[%c0_20, %c224] : memref<8x256xf32, #tpu.memory_space<vmem>>, vector<4x16xf32>
    tpu.vector_store %arg8[%c0_20, %c224], %55 {strides = array<i32>} : memref<8x256xf32, #tpu.memory_space<vmem>>, vector<4x16xf32>,
    %57 = vector.extract_strided_slice %11 {offsets = [0, 15, 0], sizes = [4, 1, 16], strides = [1, 1, 1]} : vector<4x16x16xf32> to vector<4x1x16xf32>
    %58 = vector.shape_cast %57 : vector<4x1x16xf32> to vector<4x16xf32>
    %c0_21 = arith.constant 0 : index
    %c240 = arith.constant 240 : index
    %59 = vector.load %arg8[%c0_21, %c240] : memref<8x256xf32, #tpu.memory_space<vmem>>, vector<4x16xf32>
    tpu.vector_store %arg8[%c0_21, %c240], %58 {strides = array<i32>} : memref<8x256xf32, #tpu.memory_space<vmem>>, vector<4x16xf32>,
    %c0_22 = arith.constant 0 : index
    %c0_23 = arith.constant 0 : index
    %c0_24 = arith.constant 0 : index
    %60 = vector.load %arg3[%c0_22, %c0_23, %c0_24] : memref<1x4x256xf32, #tpu.memory_space<vmem>>, vector<1x4x256xf32>
    %61 = vector.shape_cast %60 : vector<1x4x256xf32> to vector<4x256xf32>
    %c4 = arith.constant 4 : index
    %c0_25 = arith.constant 0 : index
    %62 = vector.load %arg8[%c4, %c0_25] : memref<8x256xf32, #tpu.memory_space<vmem>>, vector<4x256xf32>
    tpu.vector_store %arg8[%c4, %c0_25], %61 {strides = array<i32>} : memref<8x256xf32, #tpu.memory_space<vmem>>, vector<4x256xf32>,
    %c0_26 = arith.constant 0 : index
    %c0_27 = arith.constant 0 : index
    %63 = vector.load %arg5[%c0_26, %c0_27] : memref<16x8xf32, #tpu.memory_space<vmem>>, vector<16x8xf32>
    %c0_28 = arith.constant 0 : index
    %c0_29 = arith.constant 0 : index
    %64 = vector.load %arg8[%c0_28, %c0_29] : memref<8x256xf32, #tpu.memory_space<vmem>>, vector<8x256xf32>
    %cst_30 = arith.constant dense<0.000000e+00> : vector<16x256xf32>
    %65 = tpu.matmul %63, %64, %cst_30 {dimension_numbers = #tpu.dot_dimension_numbers<[1], [0], [0], [1], [0, 0, 1, 1], [], []>} : vector<16x8xf32>, vector<8x256xf32>, vector<16x256xf32> -> vector<16x256xf32>
    %c0_31 = arith.constant 0 : index
    %c0_32 = arith.constant 0 : index
    %66 = vector.load %arg6[%c0_31, %c0_32] : memref<16x1xf32, #tpu.memory_space<vmem>>, vector<16x1xf32>
    %67 = vector.broadcast %66 : vector<16x1xf32> to vector<16x256xf32>
    %68 = arith.addf %65, %67 : vector<16x256xf32>
    %cst_33 = arith.constant 0.000000e+00 : f32
    %69 = vector.broadcast %cst_33 : f32 to vector<16x256xf32>
    %70 = arith.maximumf %68, %69 : vector<16x256xf32>
    %c0_34 = arith.constant 0 : index
    %c0_35 = arith.constant 0 : index
    %c0_36 = arith.constant 0 : index
    %71 = vector.load %arg7[%c0_34, %c0_35, %c0_36] : memref<1x16x256xf32, #tpu.memory_space<vmem>>, vector<1x16x256xf32>
    %72 = vector.shape_cast %71 : vector<1x16x256xf32> to vector<16x256xf32>
    %73 = vector.shape_cast %70 : vector<16x256xf32> to vector<1x16x256xf32>
    tpu.vector_store %arg7[%c0_34, %c0_35, %c0_36], %73 {strides = array<i32>} : memref<1x16x256xf32, #tpu.memory_space<vmem>>, vector<1x16x256xf32>,
    return
  }
  func.func @transform_0(%arg0: i32, %arg1: i32) -> (i32, i32, i32, i32) {
    %c0_i32 = arith.constant 0 : i32
    %c0_i32_0 = arith.constant 0 : i32
    %c0_i32_1 = arith.constant 0 : i32
    return %arg0, %c0_i32, %arg1, %c0_i32_0 : i32, i32, i32, i32
  }
  func.func @transform_1(%arg0: i32, %arg1: i32) -> (i32, i32, i32) {
    %c0_i32 = arith.constant 0 : i32
    %c0_i32_0 = arith.constant 0 : i32
    return %arg0, %c0_i32, %arg1 : i32, i32, i32
  }
  func.func @transform_2(%arg0: i32, %arg1: i32) -> (i32, i32) {
    %c0_i32 = arith.constant 0 : i32
    %c0_i32_0 = arith.constant 0 : i32
    %c0_i32_1 = arith.constant 0 : i32
    return %c0_i32, %c0_i32_0 : i32, i32
  }
  func.func @transform_3(%arg0: i32, %arg1: i32) -> (i32, i32) {
    %c0_i32 = arith.constant 0 : i32
    %c0_i32_0 = arith.constant 0 : i32
    %c0_i32_1 = arith.constant 0 : i32
    return %c0_i32, %c0_i32_0 : i32, i32
  }
  func.func @transform_4(%arg0: i32, %arg1: i32) -> (i32, i32) {
    %c0_i32 = arith.constant 0 : i32
    %c0_i32_0 = arith.constant 0 : i32
    %c0_i32_1 = arith.constant 0 : i32
    return %c0_i32, %c0_i32_0 : i32, i32
  }
  func.func @transform_5(%arg0: i32, %arg1: i32) -> (i32, i32, i32) {
    %c0_i32 = arith.constant 0 : i32
    %c0_i32_0 = arith.constant 0 : i32
    return %arg0, %c0_i32, %arg1 : i32, i32, i32
  }
}

module attributes {stable_mosaic.version = 11 : i64} {
  func.func @_decoder_pool_kernel(%arg0: i32, %arg1: i32, %arg2: memref<1x4x16x64xf32, #tpu.memory_space<vmem>>, %arg3: memref<1x4x256xf32, #tpu.memory_space<vmem>>, %arg4: memref<32x32xf32, #tpu.memory_space<vmem>>, %arg5: memref<16x8xf32, #tpu.memory_space<vmem>>, %arg6: memref<16x1xf32, #tpu.memory_space<vmem>>, %arg7: memref<1x16x256xf32, #tpu.memory_space<vmem>>, %arg8: memref<8x256xf32, #tpu.memory_space<vmem>>) attributes {dimension_semantics = [#tpu.dimension_semantics<parallel>, #tpu.dimension_semantics<parallel>], iteration_bounds = array<i64: 2, 1>, scalar_prefetch = 0 : i64, scratch_operands = 1 : i64, tpu.core_type = #tpu.core_type<tc>, window_params = [{transform_indices = @transform_0, window_bounds = array<i64: 1, 4, 16, 64>}, {transform_indices = @transform_1, window_bounds = array<i64: 1, 4, 256>}, {pipeline_mode = #tpu.pipeline_mode<synchronous>, transform_indices = @transform_2, window_bounds = array<i64: 32, 32>}, {pipeline_mode = #tpu.pipeline_mode<synchronous>, transform_indices = @transform_3, window_bounds = array<i64: 16, 8>}, {pipeline_mode = #tpu.pipeline_mode<synchronous>, transform_indices = @transform_4, window_bounds = array<i64: 16, 1>}, {transform_indices = @transform_5, window_bounds = array<i64: 1, 16, 256>}]} {
    %c0 = arith.constant 0 : index
    %c0_0 = arith.constant 0 : index
    %c0_1 = arith.constant 0 : index
    %c0_2 = arith.constant 0 : index
    %0 = vector.load %arg2[%c0, %c0_0, %c0_1, %c0_2] : memref<1x4x16x64xf32, #tpu.memory_space<vmem>>, vector<1x4x16x64xf32>
    %1 = vector.shape_cast %0 : vector<1x4x16x64xf32> to vector<4x16x64xf32>
    %2 = vector.extract_strided_slice %1 {offsets = [0, 0, 0], sizes = [4, 16, 32], strides = [1, 1, 1]} : vector<4x16x64xf32> to vector<4x16x32xf32>
    %3 = vector.extract_strided_slice %1 {offsets = [0, 0, 32], sizes = [4, 16, 32], strides = [1, 1, 1]} : vector<4x16x64xf32> to vector<4x16x32xf32>
    %4 = arith.maximumf %2, %3 : vector<4x16x32xf32>
    %5 = vector.shape_cast %4 : vector<4x16x32xf32> to vector<64x32xf32>
    %c0_3 = arith.constant 0 : index
    %c0_4 = arith.constant 0 : index
    %6 = vector.load %arg4[%c0_3, %c0_4] : memref<32x32xf32, #tpu.memory_space<vmem>>, vector<32x32xf32>
    %cst = arith.constant dense<0.000000e+00> : vector<64x32xf32>
    %7 = tpu.matmul %5, %6, %cst {dimension_numbers = #tpu.dot_dimension_numbers<[1], [0], [0], [1], [0, 0, 1, 1], [], []>} : vector<64x32xf32>, vector<32x32xf32>, vector<64x32xf32> -> vector<64x32xf32>
    %8 = vector.extract_strided_slice %7 {offsets = [0, 0], sizes = [64, 16], strides = [1, 1]} : vector<64x32xf32> to vector<64x16xf32>
    %9 = vector.extract_strided_slice %7 {offsets = [0, 16], sizes = [64, 16], strides = [1, 1]} : vector<64x32xf32> to vector<64x16xf32>
    %10 = arith.maximumf %8, %9 : vector<64x16xf32>
    %11 = vector.shape_cast %10 : vector<64x16xf32> to vector<4x16x16xf32>
    %12 = vector.extract_strided_slice %11 {offsets = [0, 0, 0], sizes = [4, 1, 16], strides = [1, 1, 1]} : vector<4x16x16xf32> to vector<4x1x16xf32>
    %13 = vector.shape_cast %12 : vector<4x1x16xf32> to vector<4x16xf32>
    %c0_5 = arith.constant 0 : index
    %c0_6 = arith.constant 0 : index
    %14 = vector.load %arg8[%c0_5, %c0_6] : memref<8x256xf32, #tpu.memory_space<vmem>>, vector<4x16xf32>
    tpu.vector_store %arg8[%c0_5, %c0_6], %13 {strides = array<i32>} : memref<8x256xf32, #tpu.memory_space<vmem>>, vector<4x16xf32>,
    %15 = vector.extract_strided_slice %11 {offsets = [0, 1, 0], sizes = [4, 1, 16], strides = [1, 1, 1]} : vector<4x16x16xf32> to vector<4x1x16xf32>
    %16 = vector.shape_cast %15 : vector<4x1x16xf32> to vector<4x16xf32>
    %c0_7 = arith.constant 0 : index
    %c16 = arith.constant 16 : index
    %17 = vector.load %arg8[%c0_7, %c16] : memref<8x256xf32, #tpu.memory_space<vmem>>, vector<4x16xf32>
    tpu.vector_store %arg8[%c0_7, %c16], %16 {strides = array<i32>} : memref<8x256xf32, #tpu.memory_space<vmem>>, vector<4x16xf32>,
    %18 = vector.extract_strided_slice %11 {offsets = [0, 2, 0], sizes = [4, 1, 16], strides = [1, 1, 1]} : vector<4x16x16xf32> to vector<4x1x16xf32>
    %19 = vector.shape_cast %18 : vector<4x1x16xf32> to vector<4x16xf32>
    %c0_8 = arith.constant 0 : index
    %c32 = arith.constant 32 : index
    %20 = vector.load %arg8[%c0_8, %c32] : memref<8x256xf32, #tpu.memory_space<vmem>>, vector<4x16xf32>
    tpu.vector_store %arg8[%c0_8, %c32], %19 {strides = array<i32>} : memref<8x256xf32, #tpu.memory_space<vmem>>, vector<4x16xf32>,
    %21 = vector.extract_strided_slice %11 {offsets = [0, 3, 0], sizes = [4, 1, 16], strides = [1, 1, 1]} : vector<4x16x16xf32> to vector<4x1x16xf32>
    %22 = vector.shape_cast %21 : vector<4x1x16xf32> to vector<4x16xf32>
    %c0_9 = arith.constant 0 : index
    %c48 = arith.constant 48 : index
    %23 = vector.load %arg8[%c0_9, %c48] : memref<8x256xf32, #tpu.memory_space<vmem>>, vector<4x16xf32>
    tpu.vector_store %arg8[%c0_9, %c48], %22 {strides = array<i32>} : memref<8x256xf32, #tpu.memory_space<vmem>>, vector<4x16xf32>,
    %24 = vector.extract_strided_slice %11 {offsets = [0, 4, 0], sizes = [4, 1, 16], strides = [1, 1, 1]} : vector<4x16x16xf32> to vector<4x1x16xf32>
    %25 = vector.shape_cast %24 : vector<4x1x16xf32> to vector<4x16xf32>
    %c0_10 = arith.constant 0 : index
    %c64 = arith.constant 64 : index
    %26 = vector.load %arg8[%c0_10, %c64] : memref<8x256xf32, #tpu.memory_space<vmem>>, vector<4x16xf32>
    tpu.vector_store %arg8[%c0_10, %c64], %25 {strides = array<i32>} : memref<8x256xf32, #tpu.memory_space<vmem>>, vector<4x16xf32>,
    %27 = vector.extract_strided_slice %11 {offsets = [0, 5, 0], sizes = [4, 1, 16], strides = [1, 1, 1]} : vector<4x16x16xf32> to vector<4x1x16xf32>
    %28 = vector.shape_cast %27 : vector<4x1x16xf32> to vector<4x16xf32>
    %c0_11 = arith.constant 0 : index
    %c80 = arith.constant 80 : index
    %29 = vector.load %arg8[%c0_11, %c80] : memref<8x256xf32, #tpu.memory_space<vmem>>, vector<4x16xf32>
    tpu.vector_store %arg8[%c0_11, %c80], %28 {strides = array<i32>} : memref<8x256xf32, #tpu.memory_space<vmem>>, vector<4x16xf32>,
    %30 = vector.extract_strided_slice %11 {offsets = [0, 6, 0], sizes = [4, 1, 16], strides = [1, 1, 1]} : vector<4x16x16xf32> to vector<4x1x16xf32>
    %31 = vector.shape_cast %30 : vector<4x1x16xf32> to vector<4x16xf32>
    %c0_12 = arith.constant 0 : index
    %c96 = arith.constant 96 : index
    %32 = vector.load %arg8[%c0_12, %c96] : memref<8x256xf32, #tpu.memory_space<vmem>>, vector<4x16xf32>
    tpu.vector_store %arg8[%c0_12, %c96], %31 {strides = array<i32>} : memref<8x256xf32, #tpu.memory_space<vmem>>, vector<4x16xf32>,
    %33 = vector.extract_strided_slice %11 {offsets = [0, 7, 0], sizes = [4, 1, 16], strides = [1, 1, 1]} : vector<4x16x16xf32> to vector<4x1x16xf32>
    %34 = vector.shape_cast %33 : vector<4x1x16xf32> to vector<4x16xf32>
    %c0_13 = arith.constant 0 : index
    %c112 = arith.constant 112 : index
    %35 = vector.load %arg8[%c0_13, %c112] : memref<8x256xf32, #tpu.memory_space<vmem>>, vector<4x16xf32>
    tpu.vector_store %arg8[%c0_13, %c112], %34 {strides = array<i32>} : memref<8x256xf32, #tpu.memory_space<vmem>>, vector<4x16xf32>,
    %36 = vector.extract_strided_slice %11 {offsets = [0, 8, 0], sizes = [4, 1, 16], strides = [1, 1, 1]} : vector<4x16x16xf32> to vector<4x1x16xf32>
    %37 = vector.shape_cast %36 : vector<4x1x16xf32> to vector<4x16xf32>
    %c0_14 = arith.constant 0 : index
    %c128 = arith.constant 128 : index
    %38 = vector.load %arg8[%c0_14, %c128] : memref<8x256xf32, #tpu.memory_space<vmem>>, vector<4x16xf32>
    tpu.vector_store %arg8[%c0_14, %c128], %37 {strides = array<i32>} : memref<8x256xf32, #tpu.memory_space<vmem>>, vector<4x16xf32>,
    %39 = vector.extract_strided_slice %11 {offsets = [0, 9, 0], sizes = [4, 1, 16], strides = [1, 1, 1]} : vector<4x16x16xf32> to vector<4x1x16xf32>
    %40 = vector.shape_cast %39 : vector<4x1x16xf32> to vector<4x16xf32>
    %c0_15 = arith.constant 0 : index
    %c144 = arith.constant 144 : index
    %41 = vector.load %arg8[%c0_15, %c144] : memref<8x256xf32, #tpu.memory_space<vmem>>, vector<4x16xf32>
    tpu.vector_store %arg8[%c0_15, %c144], %40 {strides = array<i32>} : memref<8x256xf32, #tpu.memory_space<vmem>>, vector<4x16xf32>,
    %42 = vector.extract_strided_slice %11 {offsets = [0, 10, 0], sizes = [4, 1, 16], strides = [1, 1, 1]} : vector<4x16x16xf32> to vector<4x1x16xf32>
    %43 = vector.shape_cast %42 : vector<4x1x16xf32> to vector<4x16xf32>
    %c0_16 = arith.constant 0 : index
    %c160 = arith.constant 160 : index
    %44 = vector.load %arg8[%c0_16, %c160] : memref<8x256xf32, #tpu.memory_space<vmem>>, vector<4x16xf32>
    tpu.vector_store %arg8[%c0_16, %c160], %43 {strides = array<i32>} : memref<8x256xf32, #tpu.memory_space<vmem>>, vector<4x16xf32>,
    %45 = vector.extract_strided_slice %11 {offsets = [0, 11, 0], sizes = [4, 1, 16], strides = [1, 1, 1]} : vector<4x16x16xf32> to vector<4x1x16xf32>
    %46 = vector.shape_cast %45 : vector<4x1x16xf32> to vector<4x16xf32>
    %c0_17 = arith.constant 0 : index
    %c176 = arith.constant 176 : index
    %47 = vector.load %arg8[%c0_17, %c176] : memref<8x256xf32, #tpu.memory_space<vmem>>, vector<4x16xf32>
    tpu.vector_store %arg8[%c0_17, %c176], %46 {strides = array<i32>} : memref<8x256xf32, #tpu.memory_space<vmem>>, vector<4x16xf32>,
    %48 = vector.extract_strided_slice %11 {offsets = [0, 12, 0], sizes = [4, 1, 16], strides = [1, 1, 1]} : vector<4x16x16xf32> to vector<4x1x16xf32>
    %49 = vector.shape_cast %48 : vector<4x1x16xf32> to vector<4x16xf32>
    %c0_18 = arith.constant 0 : index
    %c192 = arith.constant 192 : index
    %50 = vector.load %arg8[%c0_18, %c192] : memref<8x256xf32, #tpu.memory_space<vmem>>, vector<4x16xf32>
    tpu.vector_store %arg8[%c0_18, %c192], %49 {strides = array<i32>} : memref<8x256xf32, #tpu.memory_space<vmem>>, vector<4x16xf32>,
    %51 = vector.extract_strided_slice %11 {offsets = [0, 13, 0], sizes = [4, 1, 16], strides = [1, 1, 1]} : vector<4x16x16xf32> to vector<4x1x16xf32>
    %52 = vector.shape_cast %51 : vector<4x1x16xf32> to vector<4x16xf32>
    %c0_19 = arith.constant 0 : index
    %c208 = arith.constant 208 : index
    %53 = vector.load %arg8[%c0_19, %c208] : memref<8x256xf32, #tpu.memory_space<vmem>>, vector<4x16xf32>
    tpu.vector_store %arg8[%c0_19, %c208], %52 {strides = array<i32>} : memref<8x256xf32, #tpu.memory_space<vmem>>, vector<4x16xf32>,
    %54 = vector.extract_strided_slice %11 {offsets = [0, 14, 0], sizes = [4, 1, 16], strides = [1, 1, 1]} : vector<4x16x16xf32> to vector<4x1x16xf32>
    %55 = vector.shape_cast %54 : vector<4x1x16xf32> to vector<4x16xf32>
    %c0_20 = arith.constant 0 : index
    %c224 = arith.constant 224 : index
    %56 = vector.load %arg8[%c0_20, %c224] : memref<8x256xf32, #tpu.memory_space<vmem>>, vector<4x16xf32>
    tpu.vector_store %arg8[%c0_20, %c224], %55 {strides = array<i32>} : memref<8x256xf32, #tpu.memory_space<vmem>>, vector<4x16xf32>,
    %57 = vector.extract_strided_slice %11 {offsets = [0, 15, 0], sizes = [4, 1, 16], strides = [1, 1, 1]} : vector<4x16x16xf32> to vector<4x1x16xf32>
    %58 = vector.shape_cast %57 : vector<4x1x16xf32> to vector<4x16xf32>
    %c0_21 = arith.constant 0 : index
    %c240 = arith.constant 240 : index
    %59 = vector.load %arg8[%c0_21, %c240] : memref<8x256xf32, #tpu.memory_space<vmem>>, vector<4x16xf32>
    tpu.vector_store %arg8[%c0_21, %c240], %58 {strides = array<i32>} : memref<8x256xf32, #tpu.memory_space<vmem>>, vector<4x16xf32>,
    %c0_22 = arith.constant 0 : index
    %c0_23 = arith.constant 0 : index
    %c0_24 = arith.constant 0 : index
    %60 = vector.load %arg3[%c0_22, %c0_23, %c0_24] : memref<1x4x256xf32, #tpu.memory_space<vmem>>, vector<1x4x256xf32>
    %61 = vector.shape_cast %60 : vector<1x4x256xf32> to vector<4x256xf32>
    %c4 = arith.constant 4 : index
    %c0_25 = arith.constant 0 : index
    %62 = vector.load %arg8[%c4, %c0_25] : memref<8x256xf32, #tpu.memory_space<vmem>>, vector<4x256xf32>
    tpu.vector_store %arg8[%c4, %c0_25], %61 {strides = array<i32>} : memref<8x256xf32, #tpu.memory_space<vmem>>, vector<4x256xf32>,
    %c0_26 = arith.constant 0 : index
    %c0_27 = arith.constant 0 : index
    %63 = vector.load %arg5[%c0_26, %c0_27] : memref<16x8xf32, #tpu.memory_space<vmem>>, vector<16x8xf32>
    %c0_28 = arith.constant 0 : index
    %c0_29 = arith.constant 0 : index
    %64 = vector.load %arg8[%c0_28, %c0_29] : memref<8x256xf32, #tpu.memory_space<vmem>>, vector<8x256xf32>
    %cst_30 = arith.constant dense<0.000000e+00> : vector<16x256xf32>
    %65 = tpu.matmul %63, %64, %cst_30 {dimension_numbers = #tpu.dot_dimension_numbers<[1], [0], [0], [1], [0, 0, 1, 1], [], []>} : vector<16x8xf32>, vector<8x256xf32>, vector<16x256xf32> -> vector<16x256xf32>
    %c0_31 = arith.constant 0 : index
    %c0_32 = arith.constant 0 : index
    %66 = vector.load %arg6[%c0_31, %c0_32] : memref<16x1xf32, #tpu.memory_space<vmem>>, vector<16x1xf32>
    %67 = vector.broadcast %66 : vector<16x1xf32> to vector<16x256xf32>
    %68 = arith.addf %65, %67 : vector<16x256xf32>
    %cst_33 = arith.constant 0.000000e+00 : f32
    %69 = vector.broadcast %cst_33 : f32 to vector<16x256xf32>
    %70 = arith.maximumf %68, %69 : vector<16x256xf32>
    %c0_34 = arith.constant 0 : index
    %c0_35 = arith.constant 0 : index
    %c0_36 = arith.constant 0 : index
    %71 = vector.load %arg7[%c0_34, %c0_35, %c0_36] : memref<1x16x256xf32, #tpu.memory_space<vmem>>, vector<1x16x256xf32>
    %72 = vector.shape_cast %71 : vector<1x16x256xf32> to vector<16x256xf32>
    %73 = vector.shape_cast %70 : vector<16x256xf32> to vector<1x16x256xf32>
    tpu.vector_store %arg7[%c0_34, %c0_35, %c0_36], %73 {strides = array<i32>} : memref<1x16x256xf32, #tpu.memory_space<vmem>>, vector<1x16x256xf32>,
    return
  }
  func.func @transform_0(%arg0: i32, %arg1: i32) -> (i32, i32, i32, i32) {
    %c0_i32 = arith.constant 0 : i32
    %c0_i32_0 = arith.constant 0 : i32
    %c0_i32_1 = arith.constant 0 : i32
    return %arg0, %c0_i32, %arg1, %c0_i32_0 : i32, i32, i32, i32
  }
  func.func @transform_1(%arg0: i32, %arg1: i32) -> (i32, i32, i32) {
    %c0_i32 = arith.constant 0 : i32
    %c0_i32_0 = arith.constant 0 : i32
    return %arg0, %c0_i32, %arg1 : i32, i32, i32
  }
  func.func @transform_2(%arg0: i32, %arg1: i32) -> (i32, i32) {
    %c0_i32 = arith.constant 0 : i32
    %c0_i32_0 = arith.constant 0 : i32
    %c0_i32_1 = arith.constant 0 : i32
    return %c0_i32, %c0_i32_0 : i32, i32
  }
  func.func @transform_3(%arg0: i32, %arg1: i32) -> (i32, i32) {
    %c0_i32 = arith.constant 0 : i32
    %c0_i32_0 = arith.constant 0 : i32
    %c0_i32_1 = arith.constant 0 : i32
    return %c0_i32, %c0_i32_0 : i32, i32
  }
  func.func @transform_4(%arg0: i32, %arg1: i32) -> (i32, i32) {
    %c0_i32 = arith.constant 0 : i32
    %c0_i32_0 = arith.constant 0 : i32
    %c0_i32_1 = arith.constant 0 : i32
    return %c0_i32, %c0_i32_0 : i32, i32
  }
  func.func @transform_5(%arg0: i32, %arg1: i32) -> (i32, i32, i32) {
    %c0_i32 = arith.constant 0 : i32
    %c0_i32_0 = arith.constant 0 : i32
    return %arg0, %c0_i32, %arg1 : i32, i32, i32
  }
}

</mosaic_0001>

<llo_original>
// kernel: tpu_custom_call.1
$region0: #{tpu_custom_call.1}
  #allocation0 [shape = 'u32[]', space=smem, size = 0x4, offset = 0x4, fixed_abs, tag = 'smem constant byte address 0x4 - core index']
  #allocation1 [shape = 'u32[144,128]{1,0:T(1,128)}', space=vmem, size = 0x12000, scoped, tag = 'internal scratch']
  #allocation2 [shape = 'f32[8,256]{1,0:T(8,128)}', space=vmem, size = 0x2000, scoped, tag = 'scratch operand']
  %s0 = inlined_call_operand.hbm [shape: f32[2,4,16,64], index: 0, kind: input, shape index: {}]
  %s1 = inlined_call_operand.vmem [shape: f32[2,4,256], index: 1, kind: input, shape index: {}]
  %s2 = inlined_call_operand.vmem [shape: f32[32,32], index: 2, kind: input, shape index: {}]
  %s3 = inlined_call_operand.vmem [shape: f32[16,8], index: 3, kind: input, shape index: {}]
  %s4 = inlined_call_operand.vmem [shape: f32[16,1], index: 4, kind: input, shape index: {}]
  %s5 = inlined_call_operand.hbm [shape: f32[2,16,256], index: 5, kind: output, shape index: {}]
  %s6 = sld [smem:[#allocation0]]
  $region57: #{tpu_custom_call.1} parent=0
    _
  %s8 = ssub.s32 1, %s6
  %s9 = scalar_select 0, %s8, %s6
  $region1: #{tpu_custom_call.1} parent=0
    #allocation3 [shape = 'u8[65536]{0}', space=vmem, size = 0x10000, scoped, tag = 'input window, operand 0']
    #allocation4 [shape = 's32[2]{0}', space=sflag, size = 0x8, scoped, tag = 'scoped memory for tpu_custom_call.1']
    #allocation5 [shape = 's32[2]{0}', space=sflag, size = 0x8, scoped, tag = 'scoped memory for tpu_custom_call.1']
    #allocation6 [shape = 'u8[32768]{0}', space=vmem, size = 0x8000, scoped, tag = 'output window, operand 0']
    %10 = vsyncpa [#allocation4], 0
    %s11 = scalar_lea.sflag [#allocation4], 1
    %12 = vsyncpa %s11, 0
    %13 = vsyncpa [#allocation5], 0
    %s14 = scalar_lea.sflag [#allocation5], 1
    %15 = vsyncpa %s14, 0
    loop: start=0, step=1, limit=4
    $region2: #{tpu_custom_call.1} parent=1 // loop_pre_header
      _
    $region3: #{tpu_custom_call.1} parent=1 // loop_header
      %s17 = sphi 0, %s21
      %p18 = scmp.ge.s32.totalorder %s17, 4
      %s24 = sphi 0, %s36
      %s25 = sphi 0, %s32
      %s26 = sphi 0, %s24
      %s27 = sphi 0, %s25
      %s28 = sphi 0, %s26
      %s29 = sphi 0, %s27
      %s41 = sphi 0, %s43
      %s44 = sphi 0, %s41
      %s45 = sphi 0, %s44
      %s61 = sphi 0, %s45
      %s69 = sphi 0, %s71
      %s72 = sphi 0, %s69
      %s73 = sphi 0, %s72
      %s89 = sphi 0, %s73
      %s93 = sphi 0, %s93
      %s95 = sphi 0, %s93
      %s96 = sphi 0, %s95
      %s110 = sphi 0, %s96
      %s114 = sphi 0, %s114
      %s116 = sphi 0, %s114
      %s117 = sphi 0, %s116
      %s131 = sphi 0, %s117
      %s135 = sphi 0, %s135
      %s137 = sphi 0, %s135
      %s138 = sphi 0, %s137
      %s152 = sphi 0, %s138
      %s160 = sphi 0, %s162
      %s163 = sphi 0, %s160
      %s164 = sphi 0, %s163
      %s180 = sphi 0, %s164
    $region4: #{tpu_custom_call.1} parent=1 // loop_header_branch
      %20 = sbr.rel (%p18) target = $region8
    $region5: #{tpu_custom_call.1} parent=1 // loop_body
      %s22 = ssub.s32 %s17, 1
      %s23 = ssub.s32 %s17, 2
      %s30 = sadd.s32 1, %s25
      %p31 = scmp.ge.s32.totalorder %s30, 1
      %s32 = scalar_select %p31, 0, %s30
      %s33 = sadd.s32 1, %s24
      %s34 = scalar_select %p31, %s33, %s24
      %p35 = scmp.ge.s32.totalorder %s34, 2
      %s36 = scalar_select %p35, 0, %s34
      %s37 = ssub.s32 %s24, %s36
      %s38 = ssub.s32 %s25, %s32
      %s39 = sor.u32 %s37, %s38
      %p40 = scmp.eq.s32.totalorder %s39, 0
      %s42 = sadd.s32 %s41, 1
      %s43 = scalar_select %p40, %s41, %s42
      %p46 = pneg %p40
      %p47 = scmp.eq.s32.totalorder %s17, 1
      %p48 = por %p46, %p47
      %p49 = scmp.ne.s32.totalorder %s41, %s44
      %p50 = scmp.eq.s32.totalorder %s17, 0
      %p51 = por %p49, %p50
      %p52 = scmp.ne.s32.totalorder %s41, %s44
      %p53 = scmp.eq.s32.totalorder %s22, 1
      %p54 = por %p52, %p53
      %p55 = scmp.ne.s32.totalorder %s44, %s45
      %p56 = scmp.eq.s32.totalorder %s22, 0
      %p57 = por %p55, %p56
      %p58 = scmp.ne.s32.totalorder %s44, %s45
      %p59 = scmp.eq.s32.totalorder %s23, 1
      %p60 = por %p58, %p59
      %p62 = scmp.ne.s32.totalorder %s45, %s61
      %p63 = scmp.eq.s32.totalorder %s23, 0
      %p64 = por %p62, %p63
      %s65 = ssub.s32 %s24, %s36
      %s66 = ssub.s32 %s25, %s32
      %s67 = sor.u32 %s65, %s66
      %p68 = scmp.eq.s32.totalorder %s67, 0
      %s70 = sadd.s32 %s69, 1
      %s71 = scalar_select %p68, %s69, %s70
      %p74 = pneg %p68
      %p75 = scmp.eq.s32.totalorder %s17, 1
      %p76 = por %p74, %p75
      %p77 = scmp.ne.s32.totalorder %s69, %s72
      %p78 = scmp.eq.s32.totalorder %s17, 0
      %p79 = por %p77, %p78
      %p80 = scmp.ne.s32.totalorder %s69, %s72
      %p81 = scmp.eq.s32.totalorder %s22, 1
      %p82 = por %p80, %p81
      %p83 = scmp.ne.s32.totalorder %s72, %s73
      %p84 = scmp.eq.s32.totalorder %s22, 0
      %p85 = por %p83, %p84
      %p86 = scmp.ne.s32.totalorder %s72, %s73
      %p87 = scmp.eq.s32.totalorder %s23, 1
      %p88 = por %p86, %p87
      %p90 = scmp.ne.s32.totalorder %s73, %s89
      %p91 = scmp.eq.s32.totalorder %s23, 0
      %p92 = por %p90, %p91
      %s94 = sadd.s32 %s93, 1
      %p97 = scmp.eq.s32.totalorder %s17, 1
      %p98 = scmp.ne.s32.totalorder %s93, %s95
      %p99 = scmp.eq.s32.totalorder %s17, 0
      %p100 = por %p98, %p99
      %p101 = scmp.ne.s32.totalorder %s93, %s95
      %p102 = scmp.eq.s32.totalorder %s22, 1
      %p103 = por %p101, %p102
      %p104 = scmp.ne.s32.totalorder %s95, %s96
      %p105 = scmp.eq.s32.totalorder %s22, 0
      %p106 = por %p104, %p105
      %p107 = scmp.ne.s32.totalorder %s95, %s96
      %p108 = scmp.eq.s32.totalorder %s23, 1
      %p109 = por %p107, %p108
      %p111 = scmp.ne.s32.totalorder %s96, %s110
      %p112 = scmp.eq.s32.totalorder %s23, 0
      %p113 = por %p111, %p112
      %s115 = sadd.s32 %s114, 1
      %p118 = scmp.eq.s32.totalorder %s17, 1
      %p119 = scmp.ne.s32.totalorder %s114, %s116
      %p120 = scmp.eq.s32.totalorder %s17, 0
      %p121 = por %p119, %p120
      %p122 = scmp.ne.s32.totalorder %s114, %s116
      %p123 = scmp.eq.s32.totalorder %s22, 1
      %p124 = por %p122, %p123
      %p125 = scmp.ne.s32.totalorder %s116, %s117
      %p126 = scmp.eq.s32.totalorder %s22, 0
      %p127 = por %p125, %p126
      %p128 = scmp.ne.s32.totalorder %s116, %s117
      %p129 = scmp.eq.s32.totalorder %s23, 1
      %p130 = por %p128, %p129
      %p132 = scmp.ne.s32.totalorder %s117, %s131
      %p133 = scmp.eq.s32.totalorder %s23, 0
      %p134 = por %p132, %p133
      %s136 = sadd.s32 %s135, 1
      %p139 = scmp.eq.s32.totalorder %s17, 1
      %p140 = scmp.ne.s32.totalorder %s135, %s137
      %p141 = scmp.eq.s32.totalorder %s17, 0
      %p142 = por %p140, %p141
      %p143 = scmp.ne.s32.totalorder %s135, %s137
      %p144 = scmp.eq.s32.totalorder %s22, 1
      %p145 = por %p143, %p144
      %p146 = scmp.ne.s32.totalorder %s137, %s138
      %p147 = scmp.eq.s32.totalorder %s22, 0
      %p148 = por %p146, %p147
      %p149 = scmp.ne.s32.totalorder %s137, %s138
      %p150 = scmp.eq.s32.totalorder %s23, 1
      %p151 = por %p149, %p150
      %p153 = scmp.ne.s32.totalorder %s138, %s152
      %p154 = scmp.eq.s32.totalorder %s23, 0
      %p155 = por %p153, %p154
      %s156 = ssub.s32 %s24, %s36
      %s157 = ssub.s32 %s25, %s32
      %s158 = sor.u32 %s156, %s157
      %p159 = scmp.eq.s32.totalorder %s158, 0
      %s161 = sadd.s32 %s160, 1
      %s162 = scalar_select %p159, %s160, %s161
      %p165 = pneg %p159
      %p166 = scmp.eq.s32.totalorder %s17, 1
      %p167 = por %p165, %p166
      %p168 = scmp.ne.s32.totalorder %s160, %s163
      %p169 = scmp.eq.s32.totalorder %s17, 0
      %p170 = por %p168, %p169
      %p171 = scmp.ne.s32.totalorder %s160, %s163
      %p172 = scmp.eq.s32.totalorder %s22, 1
      %p173 = por %p171, %p172
      %p174 = scmp.ne.s32.totalorder %s163, %s164
      %p175 = scmp.eq.s32.totalorder %s22, 0
      %p176 = por %p174, %p175
      %p177 = scmp.ne.s32.totalorder %s163, %s164
      %p178 = scmp.eq.s32.totalorder %s23, 1
      %p179 = por %p177, %p178
      %p181 = scmp.ne.s32.totalorder %s164, %s180
      %p182 = scmp.eq.s32.totalorder %s23, 0
      %p183 = por %p181, %p182
      %p184 = scmp.le.s32.totalorder 1, %s17
      %p185 = scmp.lt.s32.totalorder %s17, 3
      %p186 = pnand %p184, %p185
      %p187 = pneg %p186
      // Predicated region
      $region9: #{tpu_custom_call.1} parent=5 // pred_check
        _
      $region10: #{tpu_custom_call.1} parent=5 // pred_check_branch
        %189 = sbr.rel (%p186) target = $region12
      $region11: #{tpu_custom_call.1} parent=5 // pred_region
        %s190 = ssub.s32 %s17, 1
        // Predicated region
        $region13: #{tpu_custom_call.1} parent=11 // pred_check
          %p191 = pneg %p106
        $region14: #{tpu_custom_call.1} parent=11 // pred_check_branch
          %193 = sbr.rel (%p191) target = $region16
        $region15: #{tpu_custom_call.1} parent=11 // pred_region
          _
        $region16: #{tpu_custom_call.1} parent=11 // pred_fallthru
          _
        // Predicated region
        $region17: #{tpu_custom_call.1} parent=11 // pred_check
          %p194 = pneg %p127
        $region18: #{tpu_custom_call.1} parent=11 // pred_check_branch
          %196 = sbr.rel (%p194) target = $region20
        $region19: #{tpu_custom_call.1} parent=11 // pred_region
          _
        $region20: #{tpu_custom_call.1} parent=11 // pred_fallthru
          _
        // Predicated region
        $region21: #{tpu_custom_call.1} parent=11 // pred_check
          %p197 = pneg %p148
        $region22: #{tpu_custom_call.1} parent=11 // pred_check_branch
          %199 = sbr.rel (%p197) target = $region24
        $region23: #{tpu_custom_call.1} parent=11 // pred_region
          _
        $region24: #{tpu_custom_call.1} parent=11 // pred_fallthru
          _
      $region12: #{tpu_custom_call.1} parent=5 // pred_fallthru
        _
      %p200 = scmp.lt.s32.totalorder %s17, 2
      // Predicated region
      $region25: #{tpu_custom_call.1} parent=5 // pred_check
        %p201 = pneg %p200
      $region26: #{tpu_custom_call.1} parent=5 // pred_check_branch
        %203 = sbr.rel (%p201) target = $region28
      $region27: #{tpu_custom_call.1} parent=5 // pred_region
        // Predicated region
        $region29: #{tpu_custom_call.1} parent=27 // pred_check
          %p204 = pneg %p51
        $region30: #{tpu_custom_call.1} parent=27 // pred_check_branch
          %206 = sbr.rel (%p204) target = $region32
        $region31: #{tpu_custom_call.1} parent=27 // pred_region
          %s207 = sand.u32 %s41, 1
          %s208 = scalar_lea.sflag [#allocation4], %s207
          %s209 = sand.u32 %s41, 1
          %s210 = smul.addr %s209, 64
          %s211 = scalar_lea.vmem [#allocation3], %s210
          %s212 = smul.u32 2, %s25
          %s214 = ssub.s32 1024, 1024
          %215 = vsyncadd %s208, %s214
          %s216 = smul.addr %s24, 8
          %s217 = sadd.s32 %s212, %s216
          %s218 = smul.addr %s217, 128
          %s219 = scalar_lea.hbm %s0, %s218
          %s220 = sshll.u32 %s211, 4
          %s221 = int_to_ptr.vmem [resolvable:$true] %s220
          %226 = dma.hbm_to_vmem [thread:$0]  %s219, 1024, %s221, %s208, 128, 128, 8
        $region32: #{tpu_custom_call.1} parent=27 // pred_fallthru
          _
        // Predicated region
        $region33: #{tpu_custom_call.1} parent=27 // pred_check
          %p227 = pneg %p79
        $region34: #{tpu_custom_call.1} parent=27 // pred_check_branch
          %229 = sbr.rel (%p227) target = $region36
        $region35: #{tpu_custom_call.1} parent=27 // pred_region
          %s230 = smul.u32 2, %s25
          %p231 = scmp.lt.s32.totalorder %s24, 1
          %s232 = scalar_select %p231, %s24, 1
          %p233 = scmp.lt.s32.totalorder %s230, 1
          %s234 = scalar_select %p233, %s230, 1
          %s235 = smul.addr %s232, 2
          %s236 = sadd.s32 %s234, %s235
          %s237 = smul.addr %s236, 4
          %s238 = scalar_lea.vmem %s1, %s237
          %s239 = smul.u32 2, %s25
        $region36: #{tpu_custom_call.1} parent=27 // pred_fallthru
          _
      $region28: #{tpu_custom_call.1} parent=5 // pred_fallthru
        _
      %p240 = scmp.le.s32.totalorder 1, %s17
      %p241 = scmp.lt.s32.totalorder %s17, 3
      %p242 = pnand %p240, %p241
      %p243 = pneg %p242
      // Predicated region
      $region37: #{tpu_custom_call.1} parent=5 // pred_check
        _
      $region38: #{tpu_custom_call.1} parent=5 // pred_check_branch
        %245 = sbr.rel (%p242) target = $region40
      $region39: #{tpu_custom_call.1} parent=5 // pred_region
        %s246 = ssub.s32 %s17, 1
        %s247 = sand.u32 %s44, 1
        %s248 = scalar_lea.sflag [#allocation4], %s247
        %s249 = sand.u32 %s44, 1
        %s250 = smul.addr %s249, 64
        %s251 = scalar_lea.vmem [#allocation3], %s250
        // Predicated region
        $region41: #{tpu_custom_call.1} parent=39 // pred_check
          %p252 = pneg %p57
        $region42: #{tpu_custom_call.1} parent=39 // pred_check_branch
          %254 = sbr.rel (%p252) target = $region44
        $region43: #{tpu_custom_call.1} parent=39 // pred_region
          %255 = dma.done %s248, 1024
        $region44: #{tpu_custom_call.1} parent=39 // pred_fallthru
          _
        %s256 = sand.u32 %s44, 1
        %s257 = scalar_lea.sflag [#allocation4], %s256
        %s258 = sand.u32 %s44, 1
        %s259 = smul.addr %s258, 64
        %s260 = scalar_lea.vmem [#allocation3], %s259
        %p261 = pneg %p57
        %p262 = pneg %p54
        %s263 = smul.u32 2, %s27
        %p264 = scmp.lt.s32.totalorder %s26, 1
        %s265 = scalar_select %p264, %s26, 1
        %p266 = scmp.lt.s32.totalorder %s263, 1
        %s267 = scalar_select %p266, %s263, 1
        %s268 = smul.addr %s265, 2
        %s269 = sadd.s32 %s267, %s268
        %s270 = smul.addr %s269, 4
        %s271 = scalar_lea.vmem %s1, %s270
        %p272 = pneg %p85
        %p273 = pneg %p82
        %p274 = pneg %p106
        %p275 = pneg %p103
        %p276 = pneg %p127
        %p277 = pneg %p124
        %p278 = pneg %p148
        %p279 = pneg %p145
        %p280 = pneg %p176
        %p281 = pneg %p173
        %s282 = sand.u32 %s163, 1
        %s283 = scalar_lea.sflag [#allocation5], %s282
        %s284 = sand.u32 %s163, 1
        %s285 = smul.addr %s284, 32
        %s286 = scalar_lea.vmem [#allocation6], %s285
        %s287 = smul.u32 2, %s27
        %s288 = smul.u32 2, %s27
        %p289 = scmp.lt.s32.totalorder %s26, 1
        %s290 = scalar_select %p289, %s26, 1
        %p291 = scmp.lt.s32.totalorder %s288, 1
        %s292 = scalar_select %p291, %s288, 1
        %s293 = smul.addr %s290, 2
        %s294 = sadd.s32 %s292, %s293
        %s295 = smul.addr %s294, 4
        %s296 = scalar_lea.vmem %s1, %s295
        %s297 = smul.u32 2, %s27
        %s298 = smul.u32 2, %s27
        %v299 = vld [vmem:[%s251] sm:$0xff]
        %v300 = vld [vmem:[%s251 + $0x8] sm:$0xff]
        %v301 = vld [vmem:[%s251 + $0x10] sm:$0xff]
        %v302 = vld [vmem:[%s251 + $0x18] sm:$0xff]
        %v303 = vld [vmem:[%s251 + $0x20] sm:$0xff]
        %v304 = vld [vmem:[%s251 + $0x28] sm:$0xff]
        %v305 = vld [vmem:[%s251 + $0x30] sm:$0xff]
        %v306 = vld [vmem:[%s251 + $0x38] sm:$0xff]
        %315 = vrot.lane.b32.xlu0 %v299, 96
        %v316 = vpop.permute.xlu0 %315
        %317 = vrot.lane.b32.xlu0 %v300, 96
        %v318 = vpop.permute.xlu0 %317
        %319 = vrot.lane.b32.xlu0 %v301, 96
        %v320 = vpop.permute.xlu0 %319
        %321 = vrot.lane.b32.xlu0 %v302, 96
        %v322 = vpop.permute.xlu0 %321
        %323 = vrot.lane.b32.xlu0 %v303, 96
        %v324 = vpop.permute.xlu0 %323
        %325 = vrot.lane.b32.xlu0 %v304, 96
        %v326 = vpop.permute.xlu0 %325
        %327 = vrot.lane.b32.xlu0 %v305, 96
        %v328 = vpop.permute.xlu0 %327
        %329 = vrot.lane.b32.xlu0 %v306, 96
        %v330 = vpop.permute.xlu0 %329
        %v339 = vmax.f32 %v299, %v316
        %v340 = vmax.f32 %v300, %v318
        %v341 = vmax.f32 %v301, %v320
        %v342 = vmax.f32 %v302, %v322
        %v343 = vmax.f32 %v303, %v324
        %v344 = vmax.f32 %v304, %v326
        %v345 = vmax.f32 %v305, %v328
        %v346 = vmax.f32 %v306, %v330
        %v347 = vld [vmem:[%s2] sm:$0xff]
        %v348 = vld [vmem:[%s2 + $0x8] sm:$0xff]
        %v349 = vld [vmem:[%s2 + $0x10] sm:$0xff]
        %v350 = vld [vmem:[%s2 + $0x18] sm:$0xff]
        %vm351 = vcmask 261120
        %v353 = vsel %vm351, %v339, 0
        %v356 = vsel %vm351, %v340, 0
        %v359 = vsel %vm351, %v341, 0
        %v362 = vsel %vm351, %v342, 0
        %v365 = vsel %vm351, %v343, 0
        %v368 = vsel %vm351, %v344, 0
        %v371 = vsel %vm351, %v345, 0
        %v374 = vsel %vm351, %v346, 0
        %376 = vmatprep.subr.mxu0 0.0
        %377 = vmatpush1.msra.mxu0 %v347
        %378 = vmatprep.subr.mxu0 0.0
        %379 = vmatpush1.msra.mxu0 %v348
        %380 = vmatprep.subr.mxu0 0.0
        %381 = vmatpush1.msra.mxu0 %v349
        %382 = vmatprep.subr.mxu0 0.0
        %383 = vmatpush1.msra.mxu0 %v350
        %384 = vmatprep.subr.mxu0 0.0
        %385 = vmatpush1.msra.mxu0 0.0
        %386 = vmatprep.subr.mxu0 0.0
        %387 = vmatpush1.msra.mxu0 0.0
        %388 = vmatprep.subr.mxu0 0.0
        %389 = vmatpush1.msra.mxu0 0.0
        %390 = vmatprep.subr.mxu0 0.0
        %391 = vmatpush1.msra.mxu0 0.0
        %392 = vmatprep.subr.mxu0 0.0
        %393 = vmatpush1.msra.mxu0 0.0
        %394 = vmatprep.subr.mxu0 0.0
        %395 = vmatpush1.msra.mxu0 0.0
        %396 = vmatprep.subr.mxu0 0.0
        %397 = vmatpush1.msra.mxu0 0.0
        %398 = vmatprep.subr.mxu0 0.0
        %399 = vmatpush1.msra.mxu0 0.0
        %400 = vmatprep.subr.mxu0 0.0
        %401 = vmatpush1.msra.mxu0 0.0
        %402 = vmatprep.subr.mxu0 0.0
        %403 = vmatpush1.msra.mxu0 0.0
        %404 = vmatprep.subr.mxu0 0.0
        %405 = vmatpush1.msra.mxu0 0.0
        %406 = vmatprep.subr.mxu0 0.0
        %407 = vmatpush1.msra.mxu0 0.0
        %408 = vmatprep.subr.mxu0 0.0
        %409 = vmatpush1.msra.mxu0 0.0
        %410 = vmatprep.subr.mxu0 0.0
        %411 = vmatpush1.msra.mxu0 0.0
        %412 = vmatprep.subr.mxu0 0.0
        %413 = vmatpush1.msra.mxu0 0.0
        %414 = vmatprep.subr.mxu0 0.0
        %415 = vmatpush1.msra.mxu0 0.0
        %416 = vmatprep.subr.mxu0 0.0
        %417 = vmatpush1.msra.mxu0 0.0
        %418 = vmatprep.subr.mxu0 0.0
        %419 = vmatpush1.msra.mxu0 0.0
        %420 = vmatprep.subr.mxu0 0.0
        %421 = vmatpush1.msra.mxu0 0.0
        %422 = vmatprep.subr.mxu0 0.0
        %423 = vmatpush1.msra.mxu0 0.0
        %424 = vmatprep.subr.mxu0 0.0
        %425 = vmatpush1.msra.mxu0 0.0
        %426 = vmatprep.subr.mxu0 0.0
        %427 = vmatpush1.msra.mxu0 0.0
        %428 = vmatprep.subr.mxu0 0.0
        %429 = vmatpush1.msra.mxu0 0.0
        %430 = vmatprep.subr.mxu0 0.0
        %431 = vmatpush1.msra.mxu0 0.0
        %432 = vmatprep.subr.mxu0 0.0
        %433 = vmatpush1.msra.mxu0 0.0
        %434 = vmatprep.subr.mxu0 0.0
        %435 = vmatpush1.msra.mxu0 0.0
        %436 = vmatprep.subr.mxu0 0.0
        %437 = vmatpush1.msra.mxu0 0.0
        %438 = vmatprep.subr.mxu0 0.0
        %439 = vmatpush1.msra.mxu0 0.0
        %440 = vmatprep.mubr.f32.mxu0 0.0
        %441 = vmatmul.mubr.f32.gmra.mrb[0].mxu0 %v353
        %v442 = vpop.f32.mrb[0].mxu0
        %v443 = vadd.f32 0.0, %v442
        %v444 = vpop.f32.mrb[0].mxu0
        %445 = vmatprep.mubr.f32.mxu0 0.0
        %446 = vmatmul.mubr.f32.gmra.mrb[0].mxu0 %v356
        %v447 = vpop.f32.mrb[0].mxu0
        %v448 = vadd.f32 0.0, %v447
        %v449 = vpop.f32.mrb[0].mxu0
        %450 = vmatprep.mubr.f32.mxu0 0.0
        %451 = vmatmul.mubr.f32.gmra.mrb[0].mxu0 %v359
        %v452 = vpop.f32.mrb[0].mxu0
        %v453 = vadd.f32 0.0, %v452
        %v454 = vpop.f32.mrb[0].mxu0
        %455 = vmatprep.mubr.f32.mxu0 0.0
        %456 = vmatmul.mubr.f32.gmra.mrb[0].mxu0 %v362
        %v457 = vpop.f32.mrb[0].mxu0
        %v458 = vadd.f32 0.0, %v457
        %v459 = vpop.f32.mrb[0].mxu0
        %460 = vmatprep.mubr.f32.mxu0 0.0
        %461 = vmatmul.mubr.f32.gmra.mrb[0].mxu0 %v365
        %v462 = vpop.f32.mrb[0].mxu0
        %v463 = vadd.f32 0.0, %v462
        %v464 = vpop.f32.mrb[0].mxu0
        %465 = vmatprep.mubr.f32.mxu0 0.0
        %466 = vmatmul.mubr.f32.gmra.mrb[0].mxu0 %v368
        %v467 = vpop.f32.mrb[0].mxu0
        %v468 = vadd.f32 0.0, %v467
        %v469 = vpop.f32.mrb[0].mxu0
        %470 = vmatprep.mubr.f32.mxu0 0.0
        %471 = vmatmul.mubr.f32.gmra.mrb[0].mxu0 %v371
        %v472 = vpop.f32.mrb[0].mxu0
        %v473 = vadd.f32 0.0, %v472
        %v474 = vpop.f32.mrb[0].mxu0
        %475 = vmatprep.mubr.f32.mxu0 0.0
        %476 = vmatmul.mubr.f32.gmra.mrb[0].mxu0 %v374
        %v477 = vpop.f32.mrb[0].mxu0
        %v478 = vadd.f32 0.0, %v477
        %v479 = vpop.f32.mrb[0].mxu0
        %480 = vdwg.mxu0
        %489 = vrot.lane.b32.xlu0 %v443, 112
        %v490 = vpop.permute.xlu0 %489
        %491 = vrot.lane.b32.xlu0 %v448, 112
        %v492 = vpop.permute.xlu0 %491
        %493 = vrot.lane.b32.xlu0 %v453, 112
        %v494 = vpop.permute.xlu0 %493
        %495 = vrot.lane.b32.xlu0 %v458, 112
        %v496 = vpop.permute.xlu0 %495
        %497 = vrot.lane.b32.xlu0 %v463, 112
        %v498 = vpop.permute.xlu0 %497
        %499 = vrot.lane.b32.xlu0 %v468, 112
        %v500 = vpop.permute.xlu0 %499
        %501 = vrot.lane.b32.xlu0 %v473, 112
        %v502 = vpop.permute.xlu0 %501
        %503 = vrot.lane.b32.xlu0 %v478, 112
        %v504 = vpop.permute.xlu0 %503
        %v513 = vmax.f32 %v443, %v490
        %v514 = vmax.f32 %v448, %v492
        %v515 = vmax.f32 %v453, %v494
        %v516 = vmax.f32 %v458, %v496
        %v517 = vmax.f32 %v463, %v498
        %v518 = vmax.f32 %v468, %v500
        %v519 = vmax.f32 %v473, %v502
        %v520 = vmax.f32 %v478, %v504
        %v525 = vrot.slane %v515, 7
        %vm526 = vcmask 1041409
        %v527 = vsel %vm526, %v525, %v513
        %v528 = vrot.slane %v517, 6
        %vm529 = vcmask 1042434
        %v530 = vsel %vm529, %v528, %v527
        %v531 = vrot.slane %v519, 5
        %vm532 = vcmask 1043459
        %v533 = vsel %vm532, %v531, %v530
        %vm535 = vcmask 125952
        %536 = vst.msk [vmem:[#allocation2] sm:$0xf] %vm535, %v533
        %v537 = vrot.slane %v513, 1
        %v538 = vsel %vm526, %v515, %v537
        %v539 = vrot.slane %v517, 7
        %v540 = vsel %vm529, %v539, %v538
        %v541 = vrot.slane %v519, 6
        %v542 = vsel %vm532, %v541, %v540
        %543 = vrot.lane.b32.xlu0 %v542, 16
        %v544 = vpop.permute.xlu0 %543
        %vm546 = vcmask 257152
        %547 = vst.msk [vmem:[#allocation2] sm:$0xf] %vm546, %v544
        %v548 = vrot.slane %v513, 2
        %v549 = vrot.slane %v515, 1
        %v550 = vsel %vm526, %v549, %v548
        %v551 = vsel %vm529, %v517, %v550
        %v552 = vrot.slane %v519, 7
        %v553 = vsel %vm532, %v552, %v551
        %554 = vrot.lane.b32.xlu0 %v553, 32
        %v555 = vpop.permute.xlu0 %554
        %vm557 = vcmask 388352
        %558 = vst.msk [vmem:[#allocation2] sm:$0xf] %vm557, %v555
        %v559 = vrot.slane %v513, 3
        %v560 = vrot.slane %v515, 2
        %v561 = vsel %vm526, %v560, %v559
        %v562 = vrot.slane %v517, 1
        %v563 = vsel %vm529, %v562, %v561
        %v564 = vsel %vm532, %v519, %v563
        %565 = vrot.lane.b32.xlu0 %v564, 48
        %v566 = vpop.permute.xlu0 %565
        %vm568 = vcmask 519552
        %569 = vst.msk [vmem:[#allocation2] sm:$0xf] %vm568, %v566
        %v570 = vrot.slane %v513, 4
        %v571 = vrot.slane %v515, 3
        %v572 = vsel %vm526, %v571, %v570
        %v573 = vrot.slane %v517, 2
        %v574 = vsel %vm529, %v573, %v572
        %v575 = vrot.slane %v519, 1
        %v576 = vsel %vm532, %v575, %v574
        %577 = vrot.lane.b32.xlu0 %v576, 64
        %v578 = vpop.permute.xlu0 %577
        %vm580 = vcmask 650752
        %581 = vst.msk [vmem:[#allocation2] sm:$0xf] %vm580, %v578
        %v582 = vrot.slane %v513, 5
        %v583 = vrot.slane %v515, 4
        %v584 = vsel %vm526, %v583, %v582
        %v585 = vrot.slane %v517, 3
        %v586 = vsel %vm529, %v585, %v584
        %v587 = vrot.slane %v519, 2
        %v588 = vsel %vm532, %v587, %v586
        %589 = vrot.lane.b32.xlu0 %v588, 80
        %v590 = vpop.permute.xlu0 %589
        %vm592 = vcmask 781952
        %593 = vst.msk [vmem:[#allocation2] sm:$0xf] %vm592, %v590
        %v594 = vrot.slane %v513, 6
        %v595 = vrot.slane %v515, 5
        %v596 = vsel %vm526, %v595, %v594
        %v597 = vrot.slane %v517, 4
        %v598 = vsel %vm529, %v597, %v596
        %v599 = vrot.slane %v519, 3
        %v600 = vsel %vm532, %v599, %v598
        %601 = vrot.lane.b32.xlu0 %v600, 96
        %v602 = vpop.permute.xlu0 %601
        %vm604 = vcmask 913152
        %605 = vst.msk [vmem:[#allocation2] sm:$0xf] %vm604, %v602
        %v606 = vrot.slane %v513, 7
        %v607 = vrot.slane %v515, 6
        %v608 = vsel %vm526, %v607, %v606
        %v609 = vrot.slane %v517, 5
        %v610 = vsel %vm529, %v609, %v608
        %v611 = vrot.slane %v519, 4
        %v612 = vsel %vm532, %v611, %v610
        %613 = vrot.lane.b32.xlu0 %v612, 112
        %v614 = vpop.permute.xlu0 %613
        %vm616 = vcmask 1044352
        %617 = vst.msk [vmem:[#allocation2] sm:$0xf] %vm616, %v614
        %v622 = vrot.slane %v516, 7
        %v623 = vsel %vm526, %v622, %v514
        %v624 = vrot.slane %v518, 6
        %v625 = vsel %vm529, %v624, %v623
        %v626 = vrot.slane %v520, 5
        %v627 = vsel %vm532, %v626, %v625
        %629 = vst.msk [vmem:[#allocation2 + $0x8] sm:$0xf] %vm535, %v627
        %v630 = vrot.slane %v514, 1
        %v631 = vsel %vm526, %v516, %v630
        %v632 = vrot.slane %v518, 7
        %v633 = vsel %vm529, %v632, %v631
        %v634 = vrot.slane %v520, 6
        %v635 = vsel %vm532, %v634, %v633
        %636 = vrot.lane.b32.xlu0 %v635, 16
        %v637 = vpop.permute.xlu0 %636
        %639 = vst.msk [vmem:[#allocation2 + $0x8] sm:$0xf] %vm546, %v637
        %v640 = vrot.slane %v514, 2
        %v641 = vrot.slane %v516, 1
        %v642 = vsel %vm526, %v641, %v640
        %v643 = vsel %vm529, %v518, %v642
        %v644 = vrot.slane %v520, 7
        %v645 = vsel %vm532, %v644, %v643
        %646 = vrot.lane.b32.xlu0 %v645, 32
        %v647 = vpop.permute.xlu0 %646
        %649 = vst.msk [vmem:[#allocation2 + $0x8] sm:$0xf] %vm557, %v647
        %v650 = vrot.slane %v514, 3
        %v651 = vrot.slane %v516, 2
        %v652 = vsel %vm526, %v651, %v650
        %v653 = vrot.slane %v518, 1
        %v654 = vsel %vm529, %v653, %v652
        %v655 = vsel %vm532, %v520, %v654
        %656 = vrot.lane.b32.xlu0 %v655, 48
        %v657 = vpop.permute.xlu0 %656
        %659 = vst.msk [vmem:[#allocation2 + $0x8] sm:$0xf] %vm568, %v657
        %v660 = vrot.slane %v514, 4
        %v661 = vrot.slane %v516, 3
        %v662 = vsel %vm526, %v661, %v660
        %v663 = vrot.slane %v518, 2
        %v664 = vsel %vm529, %v663, %v662
        %v665 = vrot.slane %v520, 1
        %v666 = vsel %vm532, %v665, %v664
        %667 = vrot.lane.b32.xlu0 %v666, 64
        %v668 = vpop.permute.xlu0 %667
        %670 = vst.msk [vmem:[#allocation2 + $0x8] sm:$0xf] %vm580, %v668
        %v671 = vrot.slane %v514, 5
        %v672 = vrot.slane %v516, 4
        %v673 = vsel %vm526, %v672, %v671
        %v674 = vrot.slane %v518, 3
        %v675 = vsel %vm529, %v674, %v673
        %v676 = vrot.slane %v520, 2
        %v677 = vsel %vm532, %v676, %v675
        %678 = vrot.lane.b32.xlu0 %v677, 80
        %v679 = vpop.permute.xlu0 %678
        %681 = vst.msk [vmem:[#allocation2 + $0x8] sm:$0xf] %vm592, %v679
        %v682 = vrot.slane %v514, 6
        %v683 = vrot.slane %v516, 5
        %v684 = vsel %vm526, %v683, %v682
        %v685 = vrot.slane %v518, 4
        %v686 = vsel %vm529, %v685, %v684
        %v687 = vrot.slane %v520, 3
        %v688 = vsel %vm532, %v687, %v686
        %689 = vrot.lane.b32.xlu0 %v688, 96
        %v690 = vpop.permute.xlu0 %689
        %692 = vst.msk [vmem:[#allocation2 + $0x8] sm:$0xf] %vm604, %v690
        %v693 = vrot.slane %v514, 7
        %v694 = vrot.slane %v516, 6
        %v695 = vsel %vm526, %v694, %v693
        %v696 = vrot.slane %v518, 5
        %v697 = vsel %vm529, %v696, %v695
        %v698 = vrot.slane %v520, 4
        %v699 = vsel %vm532, %v698, %v697
        %700 = vrot.lane.b32.xlu0 %v699, 112
        %v701 = vpop.permute.xlu0 %700
        %703 = vst.msk [vmem:[#allocation2 + $0x8] sm:$0xf] %vm616, %v701
        %v704 = vld [vmem:[%s296] sm:$0xff]
        %v706 = vcombine.low %v704, %v704
        %708 = vst [vmem:[#allocation2] sm:$0xf0] %v706
        %709 = vst [vmem:[#allocation2 + $0x8] sm:$0xf0] %v704
        %v710 = vld [vmem:[%s3] sm:$0xff]
        %v711 = vld [vmem:[%s3 + $0x8] sm:$0xff]
        %v712 = vld [vmem:[#allocation2] sm:$0xff]
        %v713 = vld [vmem:[#allocation2 + $0x8] sm:$0xff]
        %v714 = vld [vmem:[%s4] sm:$0xff]
        %v715 = vld [vmem:[%s4 + $0x8] sm:$0xff]
        %717 = vset.pattern.permute.xlu0 0
        %718 = vperm.xlu0 %717, %v714
        %v719 = vpop.permute.xlu0 %718
        %722 = vset.pattern.permute.xlu0 0
        %723 = vperm.xlu0 %722, %v715
        %v724 = vpop.permute.xlu0 %723
        %vm726 = vcmask 64512
        %v728 = vsel %vm726, %v710, 0
        %v731 = vsel %vm726, %v711, 0
        %733 = vmatprep.subr.mxu0 %v713
        %734 = vmatpush1.msra.mxu0 %v712
        %735 = vmatprep.subr.mxu0 0.0
        %736 = vmatpush1.msra.mxu0 0.0
        %737 = vmatprep.subr.mxu0 0.0
        %738 = vmatpush1.msra.mxu0 0.0
        %739 = vmatprep.subr.mxu0 0.0
        %740 = vmatpush1.msra.mxu0 0.0
        %741 = vmatprep.subr.mxu0 0.0
        %742 = vmatpush1.msra.mxu0 0.0
        %743 = vmatprep.subr.mxu0 0.0
        %744 = vmatpush1.msra.mxu0 0.0
        %745 = vmatprep.subr.mxu0 0.0
        %746 = vmatpush1.msra.mxu0 0.0
        %747 = vmatprep.subr.mxu0 0.0
        %748 = vmatpush1.msra.mxu0 0.0
        %749 = vmatprep.subr.mxu0 0.0
        %750 = vmatpush1.msra.mxu0 0.0
        %751 = vmatprep.subr.mxu0 0.0
        %752 = vmatpush1.msra.mxu0 0.0
        %753 = vmatprep.subr.mxu0 0.0
        %754 = vmatpush1.msra.mxu0 0.0
        %755 = vmatprep.subr.mxu0 0.0
        %756 = vmatpush1.msra.mxu0 0.0
        %757 = vmatprep.subr.mxu0 0.0
        %758 = vmatpush1.msra.mxu0 0.0
        %759 = vmatprep.subr.mxu0 0.0
        %760 = vmatpush1.msra.mxu0 0.0
        %761 = vmatprep.subr.mxu0 0.0
        %762 = vmatpush1.msra.mxu0 0.0
        %763 = vmatprep.subr.mxu0 0.0
        %764 = vmatpush1.msra.mxu0 0.0
        %765 = vmatprep.subr.mxu0 0.0
        %766 = vmatpush1.msra.mxu0 0.0
        %767 = vmatprep.subr.mxu0 0.0
        %768 = vmatpush1.msra.mxu0 0.0
        %769 = vmatprep.subr.mxu0 0.0
        %770 = vmatpush1.msra.mxu0 0.0
        %771 = vmatprep.subr.mxu0 0.0
        %772 = vmatpush1.msra.mxu0 0.0
        %773 = vmatprep.subr.mxu0 0.0
        %774 = vmatpush1.msra.mxu0 0.0
        %775 = vmatprep.subr.mxu0 0.0
        %776 = vmatpush1.msra.mxu0 0.0
        %777 = vmatprep.subr.mxu0 0.0
        %778 = vmatpush1.msra.mxu0 0.0
        %779 = vmatprep.subr.mxu0 0.0
        %780 = vmatpush1.msra.mxu0 0.0
        %781 = vmatprep.subr.mxu0 0.0
        %782 = vmatpush1.msra.mxu0 0.0
        %783 = vmatprep.subr.mxu0 0.0
        %784 = vmatpush1.msra.mxu0 0.0
        %785 = vmatprep.subr.mxu0 0.0
        %786 = vmatpush1.msra.mxu0 0.0
        %787 = vmatprep.subr.mxu0 0.0
        %788 = vmatpush1.msra.mxu0 0.0
        %789 = vmatprep.subr.mxu0 0.0
        %790 = vmatpush1.msra.mxu0 0.0
        %791 = vmatprep.subr.mxu0 0.0
        %792 = vmatpush1.msra.mxu0 0.0
        %793 = vmatprep.subr.mxu0 0.0
        %794 = vmatpush1.msra.mxu0 0.0
        %795 = vmatprep.subr.mxu0 0.0
        %796 = vmatpush1.msra.mxu0 0.0
        %797 = vmatprep.mubr.f32.mxu0 0.0
        %798 = vmatmul.mubr.f32.gmra.mrb[0].mxu0 %v728
        %v799 = vpop.f32.mrb[0].mxu0
        %v800 = vadd.f32 %v719, %v799
        %v801 = vpop.f32.mrb[0].mxu0
        %v802 = vadd.f32 %v719, %v801
        %803 = vmatprep.mubr.f32.mxu0 0.0
        %804 = vmatmul.mubr.f32.gmra.mrb[0].mxu0 %v731
        %v805 = vpop.f32.mrb[0].mxu0
        %v806 = vadd.f32 %v724, %v805
        %v807 = vpop.f32.mrb[0].mxu0
        %v808 = vadd.f32 %v724, %v807
        %809 = vdwg.mxu0
        %v810 = vmax.f32 %v800, 0.0
        %v811 = vmax.f32 %v802, 0.0
        %v812 = vmax.f32 %v806, 0.0
        %v813 = vmax.f32 %v808, 0.0
        %814 = vst [vmem:[%s286] sm:$0xff] %v810
        %815 = vst [vmem:[%s286 + $0x8] sm:$0xff] %v811
        %816 = vst [vmem:[%s286 + $0x10] sm:$0xff] %v812
        %817 = vst [vmem:[%s286 + $0x18] sm:$0xff] %v813
        %s818 = sand.u32 %s163, 1
        %s819 = scalar_lea.sflag [#allocation5], %s818
        %s820 = sand.u32 %s163, 1
        %s821 = smul.addr %s820, 32
        %s822 = scalar_lea.vmem [#allocation6], %s821
        // Predicated region
        $region45: #{tpu_custom_call.1} parent=39 // pred_check
          %p823 = pneg %p173
        $region46: #{tpu_custom_call.1} parent=39 // pred_check_branch
          %825 = sbr.rel (%p823) target = $region48
        $region47: #{tpu_custom_call.1} parent=39 // pred_region
          %s826 = smul.u32 2, %s27
          %s828 = ssub.s32 512, 512
          %829 = vsyncadd %s819, %s828
          %s830 = smul.addr %s26, 4
          %s831 = sadd.s32 %s826, %s830
          %s832 = smul.addr %s831, 128
          %s833 = scalar_lea.hbm %s5, %s832
          %s834 = sshll.u32 %s822, 4
          %s835 = int_to_ptr.vmem [resolvable:$true] %s834
          %840 = dma.vmem_to_hbm [thread:$0]  %s835, 512, %s833, %s819, 256, 256, 16
        $region48: #{tpu_custom_call.1} parent=39 // pred_fallthru
          _
      $region40: #{tpu_custom_call.1} parent=5 // pred_fallthru
        _
      %p841 = scmp.le.s32.totalorder 2, %s17
      // Predicated region
      $region49: #{tpu_custom_call.1} parent=5 // pred_check
        %p842 = pneg %p841
      $region50: #{tpu_custom_call.1} parent=5 // pred_check_branch
        %844 = sbr.rel (%p842) target = $region52
      $region51: #{tpu_custom_call.1} parent=5 // pred_region
        %s845 = ssub.s32 %s17, 2
        // Predicated region
        $region53: #{tpu_custom_call.1} parent=51 // pred_check
          %p846 = pneg %p179
        $region54: #{tpu_custom_call.1} parent=51 // pred_check_branch
          %848 = sbr.rel (%p846) target = $region56
        $region55: #{tpu_custom_call.1} parent=51 // pred_region
          %s849 = sand.u32 %s164, 1
          %s850 = scalar_lea.sflag [#allocation5], %s849
          %s851 = sand.u32 %s164, 1
          %s852 = smul.addr %s851, 32
          %s853 = scalar_lea.vmem [#allocation6], %s852
          %854 = dma.done %s850, 512
        $region56: #{tpu_custom_call.1} parent=51 // pred_fallthru
          _
      $region52: #{tpu_custom_call.1} parent=5 // pred_fallthru
        _
    $region6: #{tpu_custom_call.1} parent=1 // loop_footer
      %s21 = sadd.s32 1, %s17
    $region7: #{tpu_custom_call.1} parent=1 // loop_footer_branch
      %16 = sbr.rel target = $region3
    $region8: #{tpu_custom_call.1} parent=1 // loop_exit
      _
    %855 = vsyncpa [#allocation4], 1
    %s856 = scalar_lea.sflag [#allocation4], 1
    %857 = vsyncpa %s856, 1
    %858 = vsyncpa [#allocation5], 1
    %s859 = scalar_lea.sflag [#allocation5], 1
    %860 = vsyncpa %s859, 1

// kernel: tpu_custom_call.1
$region0: #{tpu_custom_call.1}
  #allocation0 [shape = 'u32[]', space=smem, size = 0x4, offset = 0x4, fixed_abs, tag = 'smem constant byte address 0x4 - core index']
  #allocation1 [shape = 'u32[144,128]{1,0:T(1,128)}', space=vmem, size = 0x12000, scoped, tag = 'internal scratch']
  #allocation2 [shape = 'f32[8,256]{1,0:T(8,128)}', space=vmem, size = 0x2000, scoped, tag = 'scratch operand']
  %s0 = inlined_call_operand.hbm [shape: f32[2,4,16,64], index: 0, kind: input, shape index: {}]
  %s1 = inlined_call_operand.vmem [shape: f32[2,4,256], index: 1, kind: input, shape index: {}]
  %s2 = inlined_call_operand.vmem [shape: f32[32,32], index: 2, kind: input, shape index: {}]
  %s3 = inlined_call_operand.vmem [shape: f32[16,8], index: 3, kind: input, shape index: {}]
  %s4 = inlined_call_operand.vmem [shape: f32[16,1], index: 4, kind: input, shape index: {}]
  %s5 = inlined_call_operand.hbm [shape: f32[2,16,256], index: 5, kind: output, shape index: {}]
  %s6 = sld [smem:[#allocation0]]
  $region57: #{tpu_custom_call.1} parent=0
    _
  %s8 = ssub.s32 1, %s6
  %s9 = scalar_select 0, %s8, %s6
  $region1: #{tpu_custom_call.1} parent=0
    #allocation3 [shape = 'u8[65536]{0}', space=vmem, size = 0x10000, scoped, tag = 'input window, operand 0']
    #allocation4 [shape = 's32[2]{0}', space=sflag, size = 0x8, scoped, tag = 'scoped memory for tpu_custom_call.1']
    #allocation5 [shape = 's32[2]{0}', space=sflag, size = 0x8, scoped, tag = 'scoped memory for tpu_custom_call.1']
    #allocation6 [shape = 'u8[32768]{0}', space=vmem, size = 0x8000, scoped, tag = 'output window, operand 0']
    %10 = vsyncpa [#allocation4], 0
    %s11 = scalar_lea.sflag [#allocation4], 1
    %12 = vsyncpa %s11, 0
    %13 = vsyncpa [#allocation5], 0
    %s14 = scalar_lea.sflag [#allocation5], 1
    %15 = vsyncpa %s14, 0
    loop: start=0, step=1, limit=4
    $region2: #{tpu_custom_call.1} parent=1 // loop_pre_header
      _
    $region3: #{tpu_custom_call.1} parent=1 // loop_header
      %s17 = sphi 0, %s21
      %p18 = scmp.ge.s32.totalorder %s17, 4
      %s24 = sphi 0, %s36
      %s25 = sphi 0, %s32
      %s26 = sphi 0, %s24
      %s27 = sphi 0, %s25
      %s28 = sphi 0, %s26
      %s29 = sphi 0, %s27
      %s41 = sphi 0, %s43
      %s44 = sphi 0, %s41
      %s45 = sphi 0, %s44
      %s61 = sphi 0, %s45
      %s69 = sphi 0, %s71
      %s72 = sphi 0, %s69
      %s73 = sphi 0, %s72
      %s89 = sphi 0, %s73
      %s93 = sphi 0, %s93
      %s95 = sphi 0, %s93
      %s96 = sphi 0, %s95
      %s110 = sphi 0, %s96
      %s114 = sphi 0, %s114
      %s116 = sphi 0, %s114
      %s117 = sphi 0, %s116
      %s131 = sphi 0, %s117
      %s135 = sphi 0, %s135
      %s137 = sphi 0, %s135
      %s138 = sphi 0, %s137
      %s152 = sphi 0, %s138
      %s160 = sphi 0, %s162
      %s163 = sphi 0, %s160
      %s164 = sphi 0, %s163
      %s180 = sphi 0, %s164
    $region4: #{tpu_custom_call.1} parent=1 // loop_header_branch
      %20 = sbr.rel (%p18) target = $region8
    $region5: #{tpu_custom_call.1} parent=1 // loop_body
      %s22 = ssub.s32 %s17, 1
      %s23 = ssub.s32 %s17, 2
      %s30 = sadd.s32 1, %s25
      %p31 = scmp.ge.s32.totalorder %s30, 1
      %s32 = scalar_select %p31, 0, %s30
      %s33 = sadd.s32 1, %s24
      %s34 = scalar_select %p31, %s33, %s24
      %p35 = scmp.ge.s32.totalorder %s34, 2
      %s36 = scalar_select %p35, 0, %s34
      %s37 = ssub.s32 %s24, %s36
      %s38 = ssub.s32 %s25, %s32
      %s39 = sor.u32 %s37, %s38
      %p40 = scmp.eq.s32.totalorder %s39, 0
      %s42 = sadd.s32 %s41, 1
      %s43 = scalar_select %p40, %s41, %s42
      %p46 = pneg %p40
      %p47 = scmp.eq.s32.totalorder %s17, 1
      %p48 = por %p46, %p47
      %p49 = scmp.ne.s32.totalorder %s41, %s44
      %p50 = scmp.eq.s32.totalorder %s17, 0
      %p51 = por %p49, %p50
      %p52 = scmp.ne.s32.totalorder %s41, %s44
      %p53 = scmp.eq.s32.totalorder %s22, 1
      %p54 = por %p52, %p53
      %p55 = scmp.ne.s32.totalorder %s44, %s45
      %p56 = scmp.eq.s32.totalorder %s22, 0
      %p57 = por %p55, %p56
      %p58 = scmp.ne.s32.totalorder %s44, %s45
      %p59 = scmp.eq.s32.totalorder %s23, 1
      %p60 = por %p58, %p59
      %p62 = scmp.ne.s32.totalorder %s45, %s61
      %p63 = scmp.eq.s32.totalorder %s23, 0
      %p64 = por %p62, %p63
      %s65 = ssub.s32 %s24, %s36
      %s66 = ssub.s32 %s25, %s32
      %s67 = sor.u32 %s65, %s66
      %p68 = scmp.eq.s32.totalorder %s67, 0
      %s70 = sadd.s32 %s69, 1
      %s71 = scalar_select %p68, %s69, %s70
      %p74 = pneg %p68
      %p75 = scmp.eq.s32.totalorder %s17, 1
      %p76 = por %p74, %p75
      %p77 = scmp.ne.s32.totalorder %s69, %s72
      %p78 = scmp.eq.s32.totalorder %s17, 0
      %p79 = por %p77, %p78
      %p80 = scmp.ne.s32.totalorder %s69, %s72
      %p81 = scmp.eq.s32.totalorder %s22, 1
      %p82 = por %p80, %p81
      %p83 = scmp.ne.s32.totalorder %s72, %s73
      %p84 = scmp.eq.s32.totalorder %s22, 0
      %p85 = por %p83, %p84
      %p86 = scmp.ne.s32.totalorder %s72, %s73
      %p87 = scmp.eq.s32.totalorder %s23, 1
      %p88 = por %p86, %p87
      %p90 = scmp.ne.s32.totalorder %s73, %s89
      %p91 = scmp.eq.s32.totalorder %s23, 0
      %p92 = por %p90, %p91
      %s94 = sadd.s32 %s93, 1
      %p97 = scmp.eq.s32.totalorder %s17, 1
      %p98 = scmp.ne.s32.totalorder %s93, %s95
      %p99 = scmp.eq.s32.totalorder %s17, 0
      %p100 = por %p98, %p99
      %p101 = scmp.ne.s32.totalorder %s93, %s95
      %p102 = scmp.eq.s32.totalorder %s22, 1
      %p103 = por %p101, %p102
      %p104 = scmp.ne.s32.totalorder %s95, %s96
      %p105 = scmp.eq.s32.totalorder %s22, 0
      %p106 = por %p104, %p105
      %p107 = scmp.ne.s32.totalorder %s95, %s96
      %p108 = scmp.eq.s32.totalorder %s23, 1
      %p109 = por %p107, %p108
      %p111 = scmp.ne.s32.totalorder %s96, %s110
      %p112 = scmp.eq.s32.totalorder %s23, 0
      %p113 = por %p111, %p112
      %s115 = sadd.s32 %s114, 1
      %p118 = scmp.eq.s32.totalorder %s17, 1
      %p119 = scmp.ne.s32.totalorder %s114, %s116
      %p120 = scmp.eq.s32.totalorder %s17, 0
      %p121 = por %p119, %p120
      %p122 = scmp.ne.s32.totalorder %s114, %s116
      %p123 = scmp.eq.s32.totalorder %s22, 1
      %p124 = por %p122, %p123
      %p125 = scmp.ne.s32.totalorder %s116, %s117
      %p126 = scmp.eq.s32.totalorder %s22, 0
      %p127 = por %p125, %p126
      %p128 = scmp.ne.s32.totalorder %s116, %s117
      %p129 = scmp.eq.s32.totalorder %s23, 1
      %p130 = por %p128, %p129
      %p132 = scmp.ne.s32.totalorder %s117, %s131
      %p133 = scmp.eq.s32.totalorder %s23, 0
      %p134 = por %p132, %p133
      %s136 = sadd.s32 %s135, 1
      %p139 = scmp.eq.s32.totalorder %s17, 1
      %p140 = scmp.ne.s32.totalorder %s135, %s137
      %p141 = scmp.eq.s32.totalorder %s17, 0
      %p142 = por %p140, %p141
      %p143 = scmp.ne.s32.totalorder %s135, %s137
      %p144 = scmp.eq.s32.totalorder %s22, 1
      %p145 = por %p143, %p144
      %p146 = scmp.ne.s32.totalorder %s137, %s138
      %p147 = scmp.eq.s32.totalorder %s22, 0
      %p148 = por %p146, %p147
      %p149 = scmp.ne.s32.totalorder %s137, %s138
      %p150 = scmp.eq.s32.totalorder %s23, 1
      %p151 = por %p149, %p150
      %p153 = scmp.ne.s32.totalorder %s138, %s152
      %p154 = scmp.eq.s32.totalorder %s23, 0
      %p155 = por %p153, %p154
      %s156 = ssub.s32 %s24, %s36
      %s157 = ssub.s32 %s25, %s32
      %s158 = sor.u32 %s156, %s157
      %p159 = scmp.eq.s32.totalorder %s158, 0
      %s161 = sadd.s32 %s160, 1
      %s162 = scalar_select %p159, %s160, %s161
      %p165 = pneg %p159
      %p166 = scmp.eq.s32.totalorder %s17, 1
      %p167 = por %p165, %p166
      %p168 = scmp.ne.s32.totalorder %s160, %s163
      %p169 = scmp.eq.s32.totalorder %s17, 0
      %p170 = por %p168, %p169
      %p171 = scmp.ne.s32.totalorder %s160, %s163
      %p172 = scmp.eq.s32.totalorder %s22, 1
      %p173 = por %p171, %p172
      %p174 = scmp.ne.s32.totalorder %s163, %s164
      %p175 = scmp.eq.s32.totalorder %s22, 0
      %p176 = por %p174, %p175
      %p177 = scmp.ne.s32.totalorder %s163, %s164
      %p178 = scmp.eq.s32.totalorder %s23, 1
      %p179 = por %p177, %p178
      %p181 = scmp.ne.s32.totalorder %s164, %s180
      %p182 = scmp.eq.s32.totalorder %s23, 0
      %p183 = por %p181, %p182
      %p184 = scmp.le.s32.totalorder 1, %s17
      %p185 = scmp.lt.s32.totalorder %s17, 3
      %p186 = pnand %p184, %p185
      %p187 = pneg %p186
      // Predicated region
      $region9: #{tpu_custom_call.1} parent=5 // pred_check
        _
      $region10: #{tpu_custom_call.1} parent=5 // pred_check_branch
        %189 = sbr.rel (%p186) target = $region12
      $region11: #{tpu_custom_call.1} parent=5 // pred_region
        %s190 = ssub.s32 %s17, 1
        // Predicated region
        $region13: #{tpu_custom_call.1} parent=11 // pred_check
          %p191 = pneg %p106
        $region14: #{tpu_custom_call.1} parent=11 // pred_check_branch
          %193 = sbr.rel (%p191) target = $region16
        $region15: #{tpu_custom_call.1} parent=11 // pred_region
          _
        $region16: #{tpu_custom_call.1} parent=11 // pred_fallthru
          _
        // Predicated region
        $region17: #{tpu_custom_call.1} parent=11 // pred_check
          %p194 = pneg %p127
        $region18: #{tpu_custom_call.1} parent=11 // pred_check_branch
          %196 = sbr.rel (%p194) target = $region20
        $region19: #{tpu_custom_call.1} parent=11 // pred_region
          _
        $region20: #{tpu_custom_call.1} parent=11 // pred_fallthru
          _
        // Predicated region
        $region21: #{tpu_custom_call.1} parent=11 // pred_check
          %p197 = pneg %p148
        $region22: #{tpu_custom_call.1} parent=11 // pred_check_branch
          %199 = sbr.rel (%p197) target = $region24
        $region23: #{tpu_custom_call.1} parent=11 // pred_region
          _
        $region24: #{tpu_custom_call.1} parent=11 // pred_fallthru
          _
      $region12: #{tpu_custom_call.1} parent=5 // pred_fallthru
        _
      %p200 = scmp.lt.s32.totalorder %s17, 2
      // Predicated region
      $region25: #{tpu_custom_call.1} parent=5 // pred_check
        %p201 = pneg %p200
      $region26: #{tpu_custom_call.1} parent=5 // pred_check_branch
        %203 = sbr.rel (%p201) target = $region28
      $region27: #{tpu_custom_call.1} parent=5 // pred_region
        // Predicated region
        $region29: #{tpu_custom_call.1} parent=27 // pred_check
          %p204 = pneg %p51
        $region30: #{tpu_custom_call.1} parent=27 // pred_check_branch
          %206 = sbr.rel (%p204) target = $region32
        $region31: #{tpu_custom_call.1} parent=27 // pred_region
          %s207 = sand.u32 %s41, 1
          %s208 = scalar_lea.sflag [#allocation4], %s207
          %s209 = sand.u32 %s41, 1
          %s210 = smul.addr %s209, 64
          %s211 = scalar_lea.vmem [#allocation3], %s210
          %s212 = smul.u32 2, %s25
          %s214 = ssub.s32 1024, 1024
          %215 = vsyncadd %s208, %s214
          %s216 = smul.addr %s24, 8
          %s217 = sadd.s32 %s212, %s216
          %s218 = smul.addr %s217, 128
          %s219 = scalar_lea.hbm %s0, %s218
          %s220 = sshll.u32 %s211, 4
          %s221 = int_to_ptr.vmem [resolvable:$true] %s220
          %226 = dma.hbm_to_vmem [thread:$0]  %s219, 1024, %s221, %s208, 128, 128, 8
        $region32: #{tpu_custom_call.1} parent=27 // pred_fallthru
          _
        // Predicated region
        $region33: #{tpu_custom_call.1} parent=27 // pred_check
          %p227 = pneg %p79
        $region34: #{tpu_custom_call.1} parent=27 // pred_check_branch
          %229 = sbr.rel (%p227) target = $region36
        $region35: #{tpu_custom_call.1} parent=27 // pred_region
          %s230 = smul.u32 2, %s25
          %p231 = scmp.lt.s32.totalorder %s24, 1
          %s232 = scalar_select %p231, %s24, 1
          %p233 = scmp.lt.s32.totalorder %s230, 1
          %s234 = scalar_select %p233, %s230, 1
          %s235 = smul.addr %s232, 2
          %s236 = sadd.s32 %s234, %s235
          %s237 = smul.addr %s236, 4
          %s238 = scalar_lea.vmem %s1, %s237
          %s239 = smul.u32 2, %s25
        $region36: #{tpu_custom_call.1} parent=27 // pred_fallthru
          _
      $region28: #{tpu_custom_call.1} parent=5 // pred_fallthru
        _
      %p240 = scmp.le.s32.totalorder 1, %s17
      %p241 = scmp.lt.s32.totalorder %s17, 3
      %p242 = pnand %p240, %p241
      %p243 = pneg %p242
      // Predicated region
      $region37: #{tpu_custom_call.1} parent=5 // pred_check
        _
      $region38: #{tpu_custom_call.1} parent=5 // pred_check_branch
        %245 = sbr.rel (%p242) target = $region40
      $region39: #{tpu_custom_call.1} parent=5 // pred_region
        %s246 = ssub.s32 %s17, 1
        %s247 = sand.u32 %s44, 1
        %s248 = scalar_lea.sflag [#allocation4], %s247
        %s249 = sand.u32 %s44, 1
        %s250 = smul.addr %s249, 64
        %s251 = scalar_lea.vmem [#allocation3], %s250
        // Predicated region
        $region41: #{tpu_custom_call.1} parent=39 // pred_check
          %p252 = pneg %p57
        $region42: #{tpu_custom_call.1} parent=39 // pred_check_branch
          %254 = sbr.rel (%p252) target = $region44
        $region43: #{tpu_custom_call.1} parent=39 // pred_region
          %255 = dma.done %s248, 1024
        $region44: #{tpu_custom_call.1} parent=39 // pred_fallthru
          _
        %s256 = sand.u32 %s44, 1
        %s257 = scalar_lea.sflag [#allocation4], %s256
        %s258 = sand.u32 %s44, 1
        %s259 = smul.addr %s258, 64
        %s260 = scalar_lea.vmem [#allocation3], %s259
        %p261 = pneg %p57
        %p262 = pneg %p54
        %s263 = smul.u32 2, %s27
        %p264 = scmp.lt.s32.totalorder %s26, 1
        %s265 = scalar_select %p264, %s26, 1
        %p266 = scmp.lt.s32.totalorder %s263, 1
        %s267 = scalar_select %p266, %s263, 1
        %s268 = smul.addr %s265, 2
        %s269 = sadd.s32 %s267, %s268
        %s270 = smul.addr %s269, 4
        %s271 = scalar_lea.vmem %s1, %s270
        %p272 = pneg %p85
        %p273 = pneg %p82
        %p274 = pneg %p106
        %p275 = pneg %p103
        %p276 = pneg %p127
        %p277 = pneg %p124
        %p278 = pneg %p148
        %p279 = pneg %p145
        %p280 = pneg %p176
        %p281 = pneg %p173
        %s282 = sand.u32 %s163, 1
        %s283 = scalar_lea.sflag [#allocation5], %s282
        %s284 = sand.u32 %s163, 1
        %s285 = smul.addr %s284, 32
        %s286 = scalar_lea.vmem [#allocation6], %s285
        %s287 = smul.u32 2, %s27
        %s288 = smul.u32 2, %s27
        %p289 = scmp.lt.s32.totalorder %s26, 1
        %s290 = scalar_select %p289, %s26, 1
        %p291 = scmp.lt.s32.totalorder %s288, 1
        %s292 = scalar_select %p291, %s288, 1
        %s293 = smul.addr %s290, 2
        %s294 = sadd.s32 %s292, %s293
        %s295 = smul.addr %s294, 4
        %s296 = scalar_lea.vmem %s1, %s295
        %s297 = smul.u32 2, %s27
        %s298 = smul.u32 2, %s27
        %v299 = vld [vmem:[%s251] sm:$0xff]
        %v300 = vld [vmem:[%s251 + $0x8] sm:$0xff]
        %v301 = vld [vmem:[%s251 + $0x10] sm:$0xff]
        %v302 = vld [vmem:[%s251 + $0x18] sm:$0xff]
        %v303 = vld [vmem:[%s251 + $0x20] sm:$0xff]
        %v304 = vld [vmem:[%s251 + $0x28] sm:$0xff]
        %v305 = vld [vmem:[%s251 + $0x30] sm:$0xff]
        %v306 = vld [vmem:[%s251 + $0x38] sm:$0xff]
        %315 = vrot.lane.b32.xlu0 %v299, 96
        %v316 = vpop.permute.xlu0 %315
        %317 = vrot.lane.b32.xlu0 %v300, 96
        %v318 = vpop.permute.xlu0 %317
        %319 = vrot.lane.b32.xlu0 %v301, 96
        %v320 = vpop.permute.xlu0 %319
        %321 = vrot.lane.b32.xlu0 %v302, 96
        %v322 = vpop.permute.xlu0 %321
        %323 = vrot.lane.b32.xlu0 %v303, 96
        %v324 = vpop.permute.xlu0 %323
        %325 = vrot.lane.b32.xlu0 %v304, 96
        %v326 = vpop.permute.xlu0 %325
        %327 = vrot.lane.b32.xlu0 %v305, 96
        %v328 = vpop.permute.xlu0 %327
        %329 = vrot.lane.b32.xlu0 %v306, 96
        %v330 = vpop.permute.xlu0 %329
        %v339 = vmax.f32 %v299, %v316
        %v340 = vmax.f32 %v300, %v318
        %v341 = vmax.f32 %v301, %v320
        %v342 = vmax.f32 %v302, %v322
        %v343 = vmax.f32 %v303, %v324
        %v344 = vmax.f32 %v304, %v326
        %v345 = vmax.f32 %v305, %v328
        %v346 = vmax.f32 %v306, %v330
        %v347 = vld [vmem:[%s2] sm:$0xff]
        %v348 = vld [vmem:[%s2 + $0x8] sm:$0xff]
        %v349 = vld [vmem:[%s2 + $0x10] sm:$0xff]
        %v350 = vld [vmem:[%s2 + $0x18] sm:$0xff]
        %vm351 = vcmask 261120
        %v353 = vsel %vm351, %v339, 0
        %v356 = vsel %vm351, %v340, 0
        %v359 = vsel %vm351, %v341, 0
        %v362 = vsel %vm351, %v342, 0
        %v365 = vsel %vm351, %v343, 0
        %v368 = vsel %vm351, %v344, 0
        %v371 = vsel %vm351, %v345, 0
        %v374 = vsel %vm351, %v346, 0
        %376 = vmatprep.subr.mxu0 0.0
        %377 = vmatpush1.msra.mxu0 %v347
        %378 = vmatprep.subr.mxu0 0.0
        %379 = vmatpush1.msra.mxu0 %v348
        %380 = vmatprep.subr.mxu0 0.0
        %381 = vmatpush1.msra.mxu0 %v349
        %382 = vmatprep.subr.mxu0 0.0
        %383 = vmatpush1.msra.mxu0 %v350
        %384 = vmatprep.subr.mxu0 0.0
        %385 = vmatpush1.msra.mxu0 0.0
        %386 = vmatprep.subr.mxu0 0.0
        %387 = vmatpush1.msra.mxu0 0.0
        %388 = vmatprep.subr.mxu0 0.0
        %389 = vmatpush1.msra.mxu0 0.0
        %390 = vmatprep.subr.mxu0 0.0
        %391 = vmatpush1.msra.mxu0 0.0
        %392 = vmatprep.subr.mxu0 0.0
        %393 = vmatpush1.msra.mxu0 0.0
        %394 = vmatprep.subr.mxu0 0.0
        %395 = vmatpush1.msra.mxu0 0.0
        %396 = vmatprep.subr.mxu0 0.0
        %397 = vmatpush1.msra.mxu0 0.0
        %398 = vmatprep.subr.mxu0 0.0
        %399 = vmatpush1.msra.mxu0 0.0
        %400 = vmatprep.subr.mxu0 0.0
        %401 = vmatpush1.msra.mxu0 0.0
        %402 = vmatprep.subr.mxu0 0.0
        %403 = vmatpush1.msra.mxu0 0.0
        %404 = vmatprep.subr.mxu0 0.0
        %405 = vmatpush1.msra.mxu0 0.0
        %406 = vmatprep.subr.mxu0 0.0
        %407 = vmatpush1.msra.mxu0 0.0
        %408 = vmatprep.subr.mxu0 0.0
        %409 = vmatpush1.msra.mxu0 0.0
        %410 = vmatprep.subr.mxu0 0.0
        %411 = vmatpush1.msra.mxu0 0.0
        %412 = vmatprep.subr.mxu0 0.0
        %413 = vmatpush1.msra.mxu0 0.0
        %414 = vmatprep.subr.mxu0 0.0
        %415 = vmatpush1.msra.mxu0 0.0
        %416 = vmatprep.subr.mxu0 0.0
        %417 = vmatpush1.msra.mxu0 0.0
        %418 = vmatprep.subr.mxu0 0.0
        %419 = vmatpush1.msra.mxu0 0.0
        %420 = vmatprep.subr.mxu0 0.0
        %421 = vmatpush1.msra.mxu0 0.0
        %422 = vmatprep.subr.mxu0 0.0
        %423 = vmatpush1.msra.mxu0 0.0
        %424 = vmatprep.subr.mxu0 0.0
        %425 = vmatpush1.msra.mxu0 0.0
        %426 = vmatprep.subr.mxu0 0.0
        %427 = vmatpush1.msra.mxu0 0.0
        %428 = vmatprep.subr.mxu0 0.0
        %429 = vmatpush1.msra.mxu0 0.0
        %430 = vmatprep.subr.mxu0 0.0
        %431 = vmatpush1.msra.mxu0 0.0
        %432 = vmatprep.subr.mxu0 0.0
        %433 = vmatpush1.msra.mxu0 0.0
        %434 = vmatprep.subr.mxu0 0.0
        %435 = vmatpush1.msra.mxu0 0.0
        %436 = vmatprep.subr.mxu0 0.0
        %437 = vmatpush1.msra.mxu0 0.0
        %438 = vmatprep.subr.mxu0 0.0
        %439 = vmatpush1.msra.mxu0 0.0
        %440 = vmatprep.mubr.f32.mxu0 0.0
        %441 = vmatmul.mubr.f32.gmra.mrb[0].mxu0 %v353
        %v442 = vpop.f32.mrb[0].mxu0
        %v443 = vadd.f32 0.0, %v442
        %v444 = vpop.f32.mrb[0].mxu0
        %445 = vmatprep.mubr.f32.mxu0 0.0
        %446 = vmatmul.mubr.f32.gmra.mrb[0].mxu0 %v356
        %v447 = vpop.f32.mrb[0].mxu0
        %v448 = vadd.f32 0.0, %v447
        %v449 = vpop.f32.mrb[0].mxu0
        %450 = vmatprep.mubr.f32.mxu0 0.0
        %451 = vmatmul.mubr.f32.gmra.mrb[0].mxu0 %v359
        %v452 = vpop.f32.mrb[0].mxu0
        %v453 = vadd.f32 0.0, %v452
        %v454 = vpop.f32.mrb[0].mxu0
        %455 = vmatprep.mubr.f32.mxu0 0.0
        %456 = vmatmul.mubr.f32.gmra.mrb[0].mxu0 %v362
        %v457 = vpop.f32.mrb[0].mxu0
        %v458 = vadd.f32 0.0, %v457
        %v459 = vpop.f32.mrb[0].mxu0
        %460 = vmatprep.mubr.f32.mxu0 0.0
        %461 = vmatmul.mubr.f32.gmra.mrb[0].mxu0 %v365
        %v462 = vpop.f32.mrb[0].mxu0
        %v463 = vadd.f32 0.0, %v462
        %v464 = vpop.f32.mrb[0].mxu0
        %465 = vmatprep.mubr.f32.mxu0 0.0
        %466 = vmatmul.mubr.f32.gmra.mrb[0].mxu0 %v368
        %v467 = vpop.f32.mrb[0].mxu0
        %v468 = vadd.f32 0.0, %v467
        %v469 = vpop.f32.mrb[0].mxu0
        %470 = vmatprep.mubr.f32.mxu0 0.0
        %471 = vmatmul.mubr.f32.gmra.mrb[0].mxu0 %v371
        %v472 = vpop.f32.mrb[0].mxu0
        %v473 = vadd.f32 0.0, %v472
        %v474 = vpop.f32.mrb[0].mxu0
        %475 = vmatprep.mubr.f32.mxu0 0.0
        %476 = vmatmul.mubr.f32.gmra.mrb[0].mxu0 %v374
        %v477 = vpop.f32.mrb[0].mxu0
        %v478 = vadd.f32 0.0, %v477
        %v479 = vpop.f32.mrb[0].mxu0
        %480 = vdwg.mxu0
        %489 = vrot.lane.b32.xlu0 %v443, 112
        %v490 = vpop.permute.xlu0 %489
        %491 = vrot.lane.b32.xlu0 %v448, 112
        %v492 = vpop.permute.xlu0 %491
        %493 = vrot.lane.b32.xlu0 %v453, 112
        %v494 = vpop.permute.xlu0 %493
        %495 = vrot.lane.b32.xlu0 %v458, 112
        %v496 = vpop.permute.xlu0 %495
        %497 = vrot.lane.b32.xlu0 %v463, 112
        %v498 = vpop.permute.xlu0 %497
        %499 = vrot.lane.b32.xlu0 %v468, 112
        %v500 = vpop.permute.xlu0 %499
        %501 = vrot.lane.b32.xlu0 %v473, 112
        %v502 = vpop.permute.xlu0 %501
        %503 = vrot.lane.b32.xlu0 %v478, 112
        %v504 = vpop.permute.xlu0 %503
        %v513 = vmax.f32 %v443, %v490
        %v514 = vmax.f32 %v448, %v492
        %v515 = vmax.f32 %v453, %v494
        %v516 = vmax.f32 %v458, %v496
        %v517 = vmax.f32 %v463, %v498
        %v518 = vmax.f32 %v468, %v500
        %v519 = vmax.f32 %v473, %v502
        %v520 = vmax.f32 %v478, %v504
        %v525 = vrot.slane %v515, 7
        %vm526 = vcmask 1041409
        %v527 = vsel %vm526, %v525, %v513
        %v528 = vrot.slane %v517, 6
        %vm529 = vcmask 1042434
        %v530 = vsel %vm529, %v528, %v527
        %v531 = vrot.slane %v519, 5
        %vm532 = vcmask 1043459
        %v533 = vsel %vm532, %v531, %v530
        %vm535 = vcmask 125952
        %536 = vst.msk [vmem:[#allocation2] sm:$0xf] %vm535, %v533
        %v537 = vrot.slane %v513, 1
        %v538 = vsel %vm526, %v515, %v537
        %v539 = vrot.slane %v517, 7
        %v540 = vsel %vm529, %v539, %v538
        %v541 = vrot.slane %v519, 6
        %v542 = vsel %vm532, %v541, %v540
        %543 = vrot.lane.b32.xlu0 %v542, 16
        %v544 = vpop.permute.xlu0 %543
        %vm546 = vcmask 257152
        %547 = vst.msk [vmem:[#allocation2] sm:$0xf] %vm546, %v544
        %v548 = vrot.slane %v513, 2
        %v549 = vrot.slane %v515, 1
        %v550 = vsel %vm526, %v549, %v548
        %v551 = vsel %vm529, %v517, %v550
        %v552 = vrot.slane %v519, 7
        %v553 = vsel %vm532, %v552, %v551
        %554 = vrot.lane.b32.xlu0 %v553, 32
        %v555 = vpop.permute.xlu0 %554
        %vm557 = vcmask 388352
        %558 = vst.msk [vmem:[#allocation2] sm:$0xf] %vm557, %v555
        %v559 = vrot.slane %v513, 3
        %v560 = vrot.slane %v515, 2
        %v561 = vsel %vm526, %v560, %v559
        %v562 = vrot.slane %v517, 1
        %v563 = vsel %vm529, %v562, %v561
        %v564 = vsel %vm532, %v519, %v563
        %565 = vrot.lane.b32.xlu0 %v564, 48
        %v566 = vpop.permute.xlu0 %565
        %vm568 = vcmask 519552
        %569 = vst.msk [vmem:[#allocation2] sm:$0xf] %vm568, %v566
        %v570 = vrot.slane %v513, 4
        %v571 = vrot.slane %v515, 3
        %v572 = vsel %vm526, %v571, %v570
        %v573 = vrot.slane %v517, 2
        %v574 = vsel %vm529, %v573, %v572
        %v575 = vrot.slane %v519, 1
        %v576 = vsel %vm532, %v575, %v574
        %577 = vrot.lane.b32.xlu0 %v576, 64
        %v578 = vpop.permute.xlu0 %577
        %vm580 = vcmask 650752
        %581 = vst.msk [vmem:[#allocation2] sm:$0xf] %vm580, %v578
        %v582 = vrot.slane %v513, 5
        %v583 = vrot.slane %v515, 4
        %v584 = vsel %vm526, %v583, %v582
        %v585 = vrot.slane %v517, 3
        %v586 = vsel %vm529, %v585, %v584
        %v587 = vrot.slane %v519, 2
        %v588 = vsel %vm532, %v587, %v586
        %589 = vrot.lane.b32.xlu0 %v588, 80
        %v590 = vpop.permute.xlu0 %589
        %vm592 = vcmask 781952
        %593 = vst.msk [vmem:[#allocation2] sm:$0xf] %vm592, %v590
        %v594 = vrot.slane %v513, 6
        %v595 = vrot.slane %v515, 5
        %v596 = vsel %vm526, %v595, %v594
        %v597 = vrot.slane %v517, 4
        %v598 = vsel %vm529, %v597, %v596
        %v599 = vrot.slane %v519, 3
        %v600 = vsel %vm532, %v599, %v598
        %601 = vrot.lane.b32.xlu0 %v600, 96
        %v602 = vpop.permute.xlu0 %601
        %vm604 = vcmask 913152
        %605 = vst.msk [vmem:[#allocation2] sm:$0xf] %vm604, %v602
        %v606 = vrot.slane %v513, 7
        %v607 = vrot.slane %v515, 6
        %v608 = vsel %vm526, %v607, %v606
        %v609 = vrot.slane %v517, 5
        %v610 = vsel %vm529, %v609, %v608
        %v611 = vrot.slane %v519, 4
        %v612 = vsel %vm532, %v611, %v610
        %613 = vrot.lane.b32.xlu0 %v612, 112
        %v614 = vpop.permute.xlu0 %613
        %vm616 = vcmask 1044352
        %617 = vst.msk [vmem:[#allocation2] sm:$0xf] %vm616, %v614
        %v622 = vrot.slane %v516, 7
        %v623 = vsel %vm526, %v622, %v514
        %v624 = vrot.slane %v518, 6
        %v625 = vsel %vm529, %v624, %v623
        %v626 = vrot.slane %v520, 5
        %v627 = vsel %vm532, %v626, %v625
        %629 = vst.msk [vmem:[#allocation2 + $0x8] sm:$0xf] %vm535, %v627
        %v630 = vrot.slane %v514, 1
        %v631 = vsel %vm526, %v516, %v630
        %v632 = vrot.slane %v518, 7
        %v633 = vsel %vm529, %v632, %v631
        %v634 = vrot.slane %v520, 6
        %v635 = vsel %vm532, %v634, %v633
        %636 = vrot.lane.b32.xlu0 %v635, 16
        %v637 = vpop.permute.xlu0 %636
        %639 = vst.msk [vmem:[#allocation2 + $0x8] sm:$0xf] %vm546, %v637
        %v640 = vrot.slane %v514, 2
        %v641 = vrot.slane %v516, 1
        %v642 = vsel %vm526, %v641, %v640
        %v643 = vsel %vm529, %v518, %v642
        %v644 = vrot.slane %v520, 7
        %v645 = vsel %vm532, %v644, %v643
        %646 = vrot.lane.b32.xlu0 %v645, 32
        %v647 = vpop.permute.xlu0 %646
        %649 = vst.msk [vmem:[#allocation2 + $0x8] sm:$0xf] %vm557, %v647
        %v650 = vrot.slane %v514, 3
        %v651 = vrot.slane %v516, 2
        %v652 = vsel %vm526, %v651, %v650
        %v653 = vrot.slane %v518, 1
        %v654 = vsel %vm529, %v653, %v652
        %v655 = vsel %vm532, %v520, %v654
        %656 = vrot.lane.b32.xlu0 %v655, 48
        %v657 = vpop.permute.xlu0 %656
        %659 = vst.msk [vmem:[#allocation2 + $0x8] sm:$0xf] %vm568, %v657
        %v660 = vrot.slane %v514, 4
        %v661 = vrot.slane %v516, 3
        %v662 = vsel %vm526, %v661, %v660
        %v663 = vrot.slane %v518, 2
        %v664 = vsel %vm529, %v663, %v662
        %v665 = vrot.slane %v520, 1
        %v666 = vsel %vm532, %v665, %v664
        %667 = vrot.lane.b32.xlu0 %v666, 64
        %v668 = vpop.permute.xlu0 %667
        %670 = vst.msk [vmem:[#allocation2 + $0x8] sm:$0xf] %vm580, %v668
        %v671 = vrot.slane %v514, 5
        %v672 = vrot.slane %v516, 4
        %v673 = vsel %vm526, %v672, %v671
        %v674 = vrot.slane %v518, 3
        %v675 = vsel %vm529, %v674, %v673
        %v676 = vrot.slane %v520, 2
        %v677 = vsel %vm532, %v676, %v675
        %678 = vrot.lane.b32.xlu0 %v677, 80
        %v679 = vpop.permute.xlu0 %678
        %681 = vst.msk [vmem:[#allocation2 + $0x8] sm:$0xf] %vm592, %v679
        %v682 = vrot.slane %v514, 6
        %v683 = vrot.slane %v516, 5
        %v684 = vsel %vm526, %v683, %v682
        %v685 = vrot.slane %v518, 4
        %v686 = vsel %vm529, %v685, %v684
        %v687 = vrot.slane %v520, 3
        %v688 = vsel %vm532, %v687, %v686
        %689 = vrot.lane.b32.xlu0 %v688, 96
        %v690 = vpop.permute.xlu0 %689
        %692 = vst.msk [vmem:[#allocation2 + $0x8] sm:$0xf] %vm604, %v690
        %v693 = vrot.slane %v514, 7
        %v694 = vrot.slane %v516, 6
        %v695 = vsel %vm526, %v694, %v693
        %v696 = vrot.slane %v518, 5
        %v697 = vsel %vm529, %v696, %v695
        %v698 = vrot.slane %v520, 4
        %v699 = vsel %vm532, %v698, %v697
        %700 = vrot.lane.b32.xlu0 %v699, 112
        %v701 = vpop.permute.xlu0 %700
        %703 = vst.msk [vmem:[#allocation2 + $0x8] sm:$0xf] %vm616, %v701
        %v704 = vld [vmem:[%s296] sm:$0xff]
        %v706 = vcombine.low %v704, %v704
        %708 = vst [vmem:[#allocation2] sm:$0xf0] %v706
        %709 = vst [vmem:[#allocation2 + $0x8] sm:$0xf0] %v704
        %v710 = vld [vmem:[%s3] sm:$0xff]
        %v711 = vld [vmem:[%s3 + $0x8] sm:$0xff]
        %v712 = vld [vmem:[#allocation2] sm:$0xff]
        %v713 = vld [vmem:[#allocation2 + $0x8] sm:$0xff]
        %v714 = vld [vmem:[%s4] sm:$0xff]
        %v715 = vld [vmem:[%s4 + $0x8] sm:$0xff]
        %717 = vset.pattern.permute.xlu0 0
        %718 = vperm.xlu0 %717, %v714
        %v719 = vpop.permute.xlu0 %718
        %722 = vset.pattern.permute.xlu0 0
        %723 = vperm.xlu0 %722, %v715
        %v724 = vpop.permute.xlu0 %723
        %vm726 = vcmask 64512
        %v728 = vsel %vm726, %v710, 0
        %v731 = vsel %vm726, %v711, 0
        %733 = vmatprep.subr.mxu0 %v713
        %734 = vmatpush1.msra.mxu0 %v712
        %735 = vmatprep.subr.mxu0 0.0
        %736 = vmatpush1.msra.mxu0 0.0
        %737 = vmatprep.subr.mxu0 0.0
        %738 = vmatpush1.msra.mxu0 0.0
        %739 = vmatprep.subr.mxu0 0.0
        %740 = vmatpush1.msra.mxu0 0.0
        %741 = vmatprep.subr.mxu0 0.0
        %742 = vmatpush1.msra.mxu0 0.0
        %743 = vmatprep.subr.mxu0 0.0
        %744 = vmatpush1.msra.mxu0 0.0
        %745 = vmatprep.subr.mxu0 0.0
        %746 = vmatpush1.msra.mxu0 0.0
        %747 = vmatprep.subr.mxu0 0.0
        %748 = vmatpush1.msra.mxu0 0.0
        %749 = vmatprep.subr.mxu0 0.0
        %750 = vmatpush1.msra.mxu0 0.0
        %751 = vmatprep.subr.mxu0 0.0
        %752 = vmatpush1.msra.mxu0 0.0
        %753 = vmatprep.subr.mxu0 0.0
        %754 = vmatpush1.msra.mxu0 0.0
        %755 = vmatprep.subr.mxu0 0.0
        %756 = vmatpush1.msra.mxu0 0.0
        %757 = vmatprep.subr.mxu0 0.0
        %758 = vmatpush1.msra.mxu0 0.0
        %759 = vmatprep.subr.mxu0 0.0
        %760 = vmatpush1.msra.mxu0 0.0
        %761 = vmatprep.subr.mxu0 0.0
        %762 = vmatpush1.msra.mxu0 0.0
        %763 = vmatprep.subr.mxu0 0.0
        %764 = vmatpush1.msra.mxu0 0.0
        %765 = vmatprep.subr.mxu0 0.0
        %766 = vmatpush1.msra.mxu0 0.0
        %767 = vmatprep.subr.mxu0 0.0
        %768 = vmatpush1.msra.mxu0 0.0
        %769 = vmatprep.subr.mxu0 0.0
        %770 = vmatpush1.msra.mxu0 0.0
        %771 = vmatprep.subr.mxu0 0.0
        %772 = vmatpush1.msra.mxu0 0.0
        %773 = vmatprep.subr.mxu0 0.0
        %774 = vmatpush1.msra.mxu0 0.0
        %775 = vmatprep.subr.mxu0 0.0
        %776 = vmatpush1.msra.mxu0 0.0
        %777 = vmatprep.subr.mxu0 0.0
        %778 = vmatpush1.msra.mxu0 0.0
        %779 = vmatprep.subr.mxu0 0.0
        %780 = vmatpush1.msra.mxu0 0.0
        %781 = vmatprep.subr.mxu0 0.0
        %782 = vmatpush1.msra.mxu0 0.0
        %783 = vmatprep.subr.mxu0 0.0
        %784 = vmatpush1.msra.mxu0 0.0
        %785 = vmatprep.subr.mxu0 0.0
        %786 = vmatpush1.msra.mxu0 0.0
        %787 = vmatprep.subr.mxu0 0.0
        %788 = vmatpush1.msra.mxu0 0.0
        %789 = vmatprep.subr.mxu0 0.0
        %790 = vmatpush1.msra.mxu0 0.0
        %791 = vmatprep.subr.mxu0 0.0
        %792 = vmatpush1.msra.mxu0 0.0
        %793 = vmatprep.subr.mxu0 0.0
        %794 = vmatpush1.msra.mxu0 0.0
        %795 = vmatprep.subr.mxu0 0.0
        %796 = vmatpush1.msra.mxu0 0.0
        %797 = vmatprep.mubr.f32.mxu0 0.0
        %798 = vmatmul.mubr.f32.gmra.mrb[0].mxu0 %v728
        %v799 = vpop.f32.mrb[0].mxu0
        %v800 = vadd.f32 %v719, %v799
        %v801 = vpop.f32.mrb[0].mxu0
        %v802 = vadd.f32 %v719, %v801
        %803 = vmatprep.mubr.f32.mxu0 0.0
        %804 = vmatmul.mubr.f32.gmra.mrb[0].mxu0 %v731
        %v805 = vpop.f32.mrb[0].mxu0
        %v806 = vadd.f32 %v724, %v805
        %v807 = vpop.f32.mrb[0].mxu0
        %v808 = vadd.f32 %v724, %v807
        %809 = vdwg.mxu0
        %v810 = vmax.f32 %v800, 0.0
        %v811 = vmax.f32 %v802, 0.0
        %v812 = vmax.f32 %v806, 0.0
        %v813 = vmax.f32 %v808, 0.0
        %814 = vst [vmem:[%s286] sm:$0xff] %v810
        %815 = vst [vmem:[%s286 + $0x8] sm:$0xff] %v811
        %816 = vst [vmem:[%s286 + $0x10] sm:$0xff] %v812
        %817 = vst [vmem:[%s286 + $0x18] sm:$0xff] %v813
        %s818 = sand.u32 %s163, 1
        %s819 = scalar_lea.sflag [#allocation5], %s818
        %s820 = sand.u32 %s163, 1
        %s821 = smul.addr %s820, 32
        %s822 = scalar_lea.vmem [#allocation6], %s821
        // Predicated region
        $region45: #{tpu_custom_call.1} parent=39 // pred_check
          %p823 = pneg %p173
        $region46: #{tpu_custom_call.1} parent=39 // pred_check_branch
          %825 = sbr.rel (%p823) target = $region48
        $region47: #{tpu_custom_call.1} parent=39 // pred_region
          %s826 = smul.u32 2, %s27
          %s828 = ssub.s32 512, 512
          %829 = vsyncadd %s819, %s828
          %s830 = smul.addr %s26, 4
          %s831 = sadd.s32 %s826, %s830
          %s832 = smul.addr %s831, 128
          %s833 = scalar_lea.hbm %s5, %s832
          %s834 = sshll.u32 %s822, 4
          %s835 = int_to_ptr.vmem [resolvable:$true] %s834
          %840 = dma.vmem_to_hbm [thread:$0]  %s835, 512, %s833, %s819, 256, 256, 16
        $region48: #{tpu_custom_call.1} parent=39 // pred_fallthru
          _
      $region40: #{tpu_custom_call.1} parent=5 // pred_fallthru
        _
      %p841 = scmp.le.s32.totalorder 2, %s17
      // Predicated region
      $region49: #{tpu_custom_call.1} parent=5 // pred_check
        %p842 = pneg %p841
      $region50: #{tpu_custom_call.1} parent=5 // pred_check_branch
        %844 = sbr.rel (%p842) target = $region52
      $region51: #{tpu_custom_call.1} parent=5 // pred_region
        %s845 = ssub.s32 %s17, 2
        // Predicated region
        $region53: #{tpu_custom_call.1} parent=51 // pred_check
          %p846 = pneg %p179
        $region54: #{tpu_custom_call.1} parent=51 // pred_check_branch
          %848 = sbr.rel (%p846) target = $region56
        $region55: #{tpu_custom_call.1} parent=51 // pred_region
          %s849 = sand.u32 %s164, 1
          %s850 = scalar_lea.sflag [#allocation5], %s849
          %s851 = sand.u32 %s164, 1
          %s852 = smul.addr %s851, 32
          %s853 = scalar_lea.vmem [#allocation6], %s852
          %854 = dma.done %s850, 512
        $region56: #{tpu_custom_call.1} parent=51 // pred_fallthru
          _
      $region52: #{tpu_custom_call.1} parent=5 // pred_fallthru
        _
    $region6: #{tpu_custom_call.1} parent=1 // loop_footer
      %s21 = sadd.s32 1, %s17
    $region7: #{tpu_custom_call.1} parent=1 // loop_footer_branch
      %16 = sbr.rel target = $region3
    $region8: #{tpu_custom_call.1} parent=1 // loop_exit
      _
    %855 = vsyncpa [#allocation4], 1
    %s856 = scalar_lea.sflag [#allocation4], 1
    %857 = vsyncpa %s856, 1
    %858 = vsyncpa [#allocation5], 1
    %s859 = scalar_lea.sflag [#allocation5], 1
    %860 = vsyncpa %s859, 1

</llo_original>
